<compile_context>
chip_gen: v5e
topology: v5e:2x2
jax: 0.10.0
libtpu: 0.0.40
codegen_flags: <defaults>
</compile_context>

<pallas_src>
import jax
import jax.numpy as jnp
import numpy as np
from jax import lax
from jax.experimental import pallas as pl
from jax.experimental.pallas import tpu as pltpu


def bilstm_kernel(x_ref, wih_ref, bias_ref, whh_f_ref, whh_b_ref,
                  wlin_ref, blin_ref, out_ref,
                  xpf_ref, xpb_ref, hf_ref, hb_ref):
    """Shapes (B padded to a sublane multiple, Op to a lane multiple; gates i|f|o|g):
         x_ref:   [T, B, D]   f32     wih_ref: [D, 8H] bf16 (fwd 4H | bwd 4H)
         bias:    [1, 8H]     f32     (b_ih + b_hh, both directions)
         whh_*:   [H, 4H]     f32
         wlin:    [2H, Op]    bf16    blin: [1, Op] f32
         out:     [T, B, Op]  f32
         xpf/xpb: [T, B, 4H]  bf16 scratch (x @ W_ih + b, per direction)
         hf/hb:   [T, B, H]   f32  scratch (hidden states)
    """
    T, B, D = x_ref.shape
    H = whh_f_ref.shape[0]
    G = 4 * H

    # -- phase 1: all input projections + biases, one bulk bf16 matmul ----------------
    x2 = x_ref[...].reshape(T * B, D).astype(jnp.bfloat16)
    xp = jnp.dot(x2, wih_ref[...], preferred_element_type=jnp.float32)   # [T*B, 8H]
    xp = (xp + bias_ref[...]).reshape(T, B, 2 * G)
    xpf_ref[...] = xp[:, :, 0:G].astype(xpf_ref.dtype)
    xpb_ref[...] = xp[:, :, G:2 * G].astype(xpb_ref.dtype)

    whh_f = whh_f_ref[...]
    whh_b = whh_b_ref[...]

    # -- phase 2: interleaved fwd/bwd recurrence, ONE loop of T steps -----------------
    def step(t, carry):
        h_f, c_f, h_b, c_b = carry
        tb = T - 1 - t
        # one fused [B,4H] matmul per direction; the two dots are independent
        zf = xpf_ref[t].astype(jnp.float32) + jnp.dot(
            h_f, whh_f, preferred_element_type=jnp.float32)
        zb = xpb_ref[tb].astype(jnp.float32) + jnp.dot(
            h_b, whh_b, preferred_element_type=jnp.float32)
        # gate order i|f|o|g: sigmoid over the first 3H columns, tanh over the last H
        sf = jax.nn.sigmoid(zf[:, 0:3 * H])
        gf = jnp.tanh(zf[:, 3 * H:4 * H])
        sb = jax.nn.sigmoid(zb[:, 0:3 * H])
        gb = jnp.tanh(zb[:, 3 * H:4 * H])
        c_f = sf[:, H:2 * H] * c_f + sf[:, 0:H] * gf
        c_b = sb[:, H:2 * H] * c_b + sb[:, 0:H] * gb
        h_f = sf[:, 2 * H:3 * H] * jnp.tanh(c_f)
        h_b = sb[:, 2 * H:3 * H] * jnp.tanh(c_b)
        hf_ref[t] = h_f
        hb_ref[tb] = h_b
        return h_f, c_f, h_b, c_b

    z0 = jnp.zeros((B, H), jnp.float32)
    carry = (z0, z0, z0, z0)
    if T <= 8:                       # tiny static T: full unroll at trace time
        for t in range(T):
            carry = step(t, carry)
    else:                            # moderate unroll keeps vreg pressure bounded
        lax.fori_loop(0, T, step, carry, unroll=4)

    # -- phase 3: ONE batched, lane-dense output projection ([T*B,2H] @ [2H,Op]) ------
    h2 = jnp.concatenate([hf_ref[...].reshape(T * B, H),
                          hb_ref[...].reshape(T * B, H)],
                         axis=1).astype(jnp.bfloat16)
    out = jnp.dot(h2, wlin_ref[...], preferred_element_type=jnp.float32) + blin_ref[...]
    out_ref[...] = out.reshape(T, B, out_ref.shape[2]).astype(out_ref.dtype)


def bilstm_forward(x, p):
    """x: [B, T, D_in] (PyTorch batch_first). Returns [B, T, output_size]."""
    B, T, D = x.shape
    H = p["whh_f"].shape[0]
    O = p["blin"].shape[1]
    G = 4 * H

    Bp = ((B + 7) // 8) * 8            # fill the sublane dimension
    Op = ((O + 127) // 128) * 128      # lane-dense output stores

    x_tm = jnp.transpose(x, (1, 0, 2))                     # [T, B, D]
    if Bp != B:
        x_tm = jnp.pad(x_tm, ((0, 0), (0, Bp - B), (0, 0)))

    wih = p["wih"].astype(jnp.bfloat16)
    wlin, blin = p["wlin"], p["blin"]
    if Op != O:
        wlin = jnp.pad(wlin, ((0, 0), (0, Op - O)))
        blin = jnp.pad(blin, ((0, 0), (0, Op - O)))
    wlin = wlin.astype(jnp.bfloat16)

    # -- VMEM budgeting: real footprint + margin, capped at ~85% of the chip's VMEM ---
    footprint = (T * Bp * D * 4                 # x (f32)
                 + D * 2 * G * 2                # wih (bf16)
                 + 2 * G * 4                    # bias
                 + 2 * H * G * 4                # whh_f / whh_b (f32)
                 + 2 * H * Op * 2 + Op * 4      # wlin (bf16), blin
                 + T * Bp * Op * 4              # out (f32)
                 + 2 * T * Bp * G * 2           # xpf / xpb scratch (bf16)
                 + 2 * T * Bp * H * 4)          # hf / hb scratch (f32)
    try:
        info = pltpu.get_tpu_info()
        vmem_cap = getattr(info, "vmem_capacity_bytes", 64 * 2 ** 20)
    except Exception:                           # conservative fallback
        vmem_cap = 64 * 2 ** 20
    usable = int(0.85 * vmem_cap)               # headroom for compiler-internal scratch
    want = int(1.5 * footprint) + (4 << 20)
    if want > usable:
        # TODO(synk): T-chunked grid with carried (h,c) state for footprints > VMEM.
        raise ValueError(
            f"BiLSTM single-shot VMEM footprint ({footprint} B) exceeds usable VMEM "
            f"({usable} B); a T-chunked grid is required for this shape.")
    vmem_limit = max(want, 16 * 2 ** 20)

    vmem = pl.BlockSpec(memory_space=pltpu.MemorySpace.VMEM)
    out_tm = pl.pallas_call(
        bilstm_kernel,
        out_shape=jax.ShapeDtypeStruct((T, Bp, Op), jnp.float32),
        in_specs=[vmem] * 7,
        out_specs=vmem,
        scratch_shapes=[
            pltpu.VMEM((T, Bp, G), jnp.bfloat16),     # fwd input projections (+bias)
            pltpu.VMEM((T, Bp, G), jnp.bfloat16),     # bwd input projections (+bias)
            pltpu.VMEM((T, Bp, H), jnp.float32),      # forward hidden states
            pltpu.VMEM((T, Bp, H), jnp.float32),      # backward hidden states
        ],
        compiler_params=pltpu.CompilerParams(vmem_limit_bytes=vmem_limit),
    )(x_tm, wih, p["bias"], p["whh_f"], p["whh_b"], wlin, blin)

    return jnp.transpose(out_tm[:, :B, :O], (1, 0, 2))   # [B, T, O]


def init_params(key, input_size, hidden_size, output_size):
    """Deterministic init with PyTorch LSTM/Linear shapes, repacked for the kernel."""
    H, D, O = hidden_size, input_size, output_size
    bound = 1.0 / np.sqrt(H)
    keys = jax.random.split(key, 10)

    def u(k_, shape, b):
        return jax.random.uniform(k_, shape, jnp.float32, -b, b)

    def regate(w):          # PyTorch gate order i,f,g,o  ->  kernel order i,f,o,g
        return jnp.concatenate([w[0:H], w[H:2 * H], w[3 * H:4 * H], w[2 * H:3 * H]],
                               axis=0)

    # PyTorch layouts: weight_ih [4H, D], weight_hh [4H, H], biases [4H].
    wih_f_pt, whh_f_pt = u(keys[0], (4 * H, D), bound), u(keys[1], (4 * H, H), bound)
    bih_f, bhh_f = u(keys[2], (4 * H,), bound), u(keys[3], (4 * H,), bound)
    wih_b_pt, whh_b_pt = u(keys[4], (4 * H, D), bound), u(keys[5], (4 * H, H), bound)
    bih_b, bhh_b = u(keys[6], (4 * H,), bound), u(keys[7], (4 * H,), bound)
    lb = 1.0 / np.sqrt(2 * H)
    wlin_pt = u(keys[8], (O, 2 * H), lb)   # nn.Linear weight [out, in]
    blin_pt = u(keys[9], (O,), lb)

    b_f = regate(bih_f + bhh_f)
    b_b = regate(bih_b + bhh_b)

    return {
        # Fused input-projection weight for both directions: [D, 8H] (fwd 4H | bwd 4H),
        # gate column order i|f|o|g within each direction.
        "wih": jnp.concatenate([regate(wih_f_pt).T, regate(wih_b_pt).T], axis=1),
        "whh_f": regate(whh_f_pt).T,                  # [H, 4H], gate cols i|f|o|g
        "whh_b": regate(whh_b_pt).T,                  # [H, 4H]
        "bias": jnp.concatenate([b_f, b_b]).reshape(1, 8 * H),
        "wlin": wlin_pt.T,                            # [2H, O] (rows 0:H fwd, H:2H bwd)
        "blin": blin_pt.reshape(1, O),
    }


def bilstm_ref(x, p):
    """Pure-JAX f32 reference matching PyTorch BiLSTM forward semantics."""
    B, T, D = x.shape
    H = p["whh_f"].shape[0]
    G = 4 * H
    bias = p["bias"]

    def run(wih_dir, whh, b, reverse):
        xs = jnp.transpose(x, (1, 0, 2))             # [T, B, D]
        if reverse:
            xs = xs[::-1]
        zx = jnp.einsum("tbd,dg->tbg", xs, wih_dir) + b   # [T, B, 4H]

        def step(carry, z_t):
            h, c = carry
            z = z_t + h @ whh
            i = jax.nn.sigmoid(z[:, 0:H])
            f = jax.nn.sigmoid(z[:, H:2 * H])
            o = jax.nn.sigmoid(z[:, 2 * H:3 * H])
            g = jnp.tanh(z[:, 3 * H:4 * H])
            c = f * c + i * g
            h = o * jnp.tanh(c)
            return (h, c), h

        h0 = jnp.zeros((B, H), jnp.float32)
        _, hs = lax.scan(step, (h0, h0), zx)
        return hs[::-1] if reverse else hs           # [T, B, H]

    hf = run(p["wih"][:, :G], p["whh_f"], bias[:, :G], False)
    hb = run(p["wih"][:, G:], p["whh_b"], bias[:, G:], True)
    out = hf @ p["wlin"][:H] + hb @ p["wlin"][H:] + p["blin"]
    return jnp.transpose(out, (1, 0, 2))             # [B, T, O]


if __name__ == "__main__":
    B, T, INPUT, HIDDEN, OUTPUT = 2, 8, 16, 32, 16
    key = jax.random.PRNGKey(0)
    pkey, xkey = jax.random.split(key)
    params = init_params(pkey, INPUT, HIDDEN, OUTPUT)
    x = jax.random.normal(xkey, (B, T, INPUT), jnp.float32)

    out = jax.block_until_ready(bilstm_forward(x, params))
    assert out.shape == (B, T, OUTPUT), out.shape

    ref = jax.block_until_ready(bilstm_ref(x, params))
    # bf16 bulk matmuls / bf16 xp scratch vs. a pure-f32 reference -> slightly looser tol.
    np.testing.assert_allclose(np.asarray(out), np.asarray(ref), atol=3e-2, rtol=3e-2)

    print("KERNEL_OK")
</pallas_src>

<mosaic_0001>
module attributes {stable_mosaic.version = 11 : i64} {
  func.func @bilstm_kernel(%arg0: memref<8x8x16xf32, #tpu.memory_space<vmem>>, %arg1: memref<16x256xbf16, #tpu.memory_space<vmem>>, %arg2: memref<1x256xf32, #tpu.memory_space<vmem>>, %arg3: memref<32x128xf32, #tpu.memory_space<vmem>>, %arg4: memref<32x128xf32, #tpu.memory_space<vmem>>, %arg5: memref<64x128xbf16, #tpu.memory_space<vmem>>, %arg6: memref<1x128xf32, #tpu.memory_space<vmem>>, %arg7: memref<8x8x128xf32, #tpu.memory_space<vmem>>, %arg8: memref<8x8x128xbf16, #tpu.memory_space<vmem>>, %arg9: memref<8x8x128xbf16, #tpu.memory_space<vmem>>, %arg10: memref<8x8x32xf32, #tpu.memory_space<vmem>>, %arg11: memref<8x8x32xf32, #tpu.memory_space<vmem>>) attributes {dimension_semantics = [], scalar_prefetch = 0 : i64, scratch_operands = 4 : i64, tpu.core_type = #tpu.core_type<tc>} {
    %c0 = arith.constant 0 : index
    %c0_0 = arith.constant 0 : index
    %c0_1 = arith.constant 0 : index
    %0 = vector.load %arg0[%c0, %c0_0, %c0_1] : memref<8x8x16xf32, #tpu.memory_space<vmem>>, vector<8x8x16xf32>
    %1 = vector.shape_cast %0 : vector<8x8x16xf32> to vector<64x16xf32>
    %2 = arith.truncf %1 : vector<64x16xf32> to vector<64x16xbf16>
    %c0_2 = arith.constant 0 : index
    %c0_3 = arith.constant 0 : index
    %3 = vector.load %arg1[%c0_2, %c0_3] : memref<16x256xbf16, #tpu.memory_space<vmem>>, vector<16x256xbf16>
    %cst = arith.constant dense<0.000000e+00> : vector<64x256xf32>
    %4 = tpu.matmul %2, %3, %cst {dimension_numbers = #tpu.dot_dimension_numbers<[1], [0], [0], [1], [0, 0, 1, 1], [], []>} : vector<64x16xbf16>, vector<16x256xbf16>, vector<64x256xf32> -> vector<64x256xf32>
    %c0_4 = arith.constant 0 : index
    %c0_5 = arith.constant 0 : index
    %5 = vector.load %arg2[%c0_4, %c0_5] : memref<1x256xf32, #tpu.memory_space<vmem>>, vector<1x256xf32>
    %6 = vector.broadcast %5 : vector<1x256xf32> to vector<64x256xf32>
    %7 = arith.addf %4, %6 : vector<64x256xf32>
    %8 = vector.shape_cast %7 : vector<64x256xf32> to vector<8x8x256xf32>
    %9 = vector.extract_strided_slice %8 {offsets = [0, 0, 0], sizes = [8, 8, 128], strides = [1, 1, 1]} : vector<8x8x256xf32> to vector<8x8x128xf32>
    %10 = arith.truncf %9 : vector<8x8x128xf32> to vector<8x8x128xbf16>
    %c0_6 = arith.constant 0 : index
    %c0_7 = arith.constant 0 : index
    %c0_8 = arith.constant 0 : index
    %11 = vector.load %arg8[%c0_6, %c0_7, %c0_8] : memref<8x8x128xbf16, #tpu.memory_space<vmem>>, vector<8x8x128xbf16>
    tpu.vector_store %arg8[%c0_6, %c0_7, %c0_8], %10 {strides = array<i32>} : memref<8x8x128xbf16, #tpu.memory_space<vmem>>, vector<8x8x128xbf16>,
    %12 = vector.extract_strided_slice %8 {offsets = [0, 0, 128], sizes = [8, 8, 128], strides = [1, 1, 1]} : vector<8x8x256xf32> to vector<8x8x128xf32>
    %13 = arith.truncf %12 : vector<8x8x128xf32> to vector<8x8x128xbf16>
    %c0_9 = arith.constant 0 : index
    %c0_10 = arith.constant 0 : index
    %c0_11 = arith.constant 0 : index
    %14 = vector.load %arg9[%c0_9, %c0_10, %c0_11] : memref<8x8x128xbf16, #tpu.memory_space<vmem>>, vector<8x8x128xbf16>
    tpu.vector_store %arg9[%c0_9, %c0_10, %c0_11], %13 {strides = array<i32>} : memref<8x8x128xbf16, #tpu.memory_space<vmem>>, vector<8x8x128xbf16>,
    %c0_12 = arith.constant 0 : index
    %c0_13 = arith.constant 0 : index
    %15 = vector.load %arg3[%c0_12, %c0_13] : memref<32x128xf32, #tpu.memory_space<vmem>>, vector<32x128xf32>
    %c0_14 = arith.constant 0 : index
    %c0_15 = arith.constant 0 : index
    %16 = vector.load %arg4[%c0_14, %c0_15] : memref<32x128xf32, #tpu.memory_space<vmem>>, vector<32x128xf32>
    %cst_16 = arith.constant 0.000000e+00 : f32
    %17 = vector.broadcast %cst_16 : f32 to vector<8x32xf32>
    %c0_17 = arith.constant 0 : index
    %c0_18 = arith.constant 0 : index
    %c0_19 = arith.constant 0 : index
    %18 = vector.load %arg8[%c0_17, %c0_18, %c0_19] : memref<8x8x128xbf16, #tpu.memory_space<vmem>>, vector<1x8x128xbf16>
    %19 = vector.shape_cast %18 : vector<1x8x128xbf16> to vector<8x128xbf16>
    %20 = arith.extf %19 : vector<8x128xbf16> to vector<8x128xf32>
    %cst_20 = arith.constant dense<0.000000e+00> : vector<8x128xf32>
    %21 = tpu.matmul %17, %15, %cst_20 {dimension_numbers = #tpu.dot_dimension_numbers<[1], [0], [0], [1], [0, 0, 1, 1], [], []>} : vector<8x32xf32>, vector<32x128xf32>, vector<8x128xf32> -> vector<8x128xf32>
    %22 = arith.addf %20, %21 : vector<8x128xf32>
    %c7 = arith.constant 7 : index
    %c0_21 = arith.constant 0 : index
    %c0_22 = arith.constant 0 : index
    %23 = vector.load %arg9[%c7, %c0_21, %c0_22] : memref<8x8x128xbf16, #tpu.memory_space<vmem>>, vector<1x8x128xbf16>
    %24 = vector.shape_cast %23 : vector<1x8x128xbf16> to vector<8x128xbf16>
    %25 = arith.extf %24 : vector<8x128xbf16> to vector<8x128xf32>
    %cst_23 = arith.constant dense<0.000000e+00> : vector<8x128xf32>
    %26 = tpu.matmul %17, %16, %cst_23 {dimension_numbers = #tpu.dot_dimension_numbers<[1], [0], [0], [1], [0, 0, 1, 1], [], []>} : vector<8x32xf32>, vector<32x128xf32>, vector<8x128xf32> -> vector<8x128xf32>
    %27 = arith.addf %25, %26 : vector<8x128xf32>
    %28 = vector.extract_strided_slice %22 {offsets = [0, 0], sizes = [8, 96], strides = [1, 1]} : vector<8x128xf32> to vector<8x96xf32>
    %29 = arith.negf %28 : vector<8x96xf32>
    %30 = math.exp %29 : vector<8x96xf32>
    %cst_24 = arith.constant 1.000000e+00 : f32
    %31 = vector.broadcast %cst_24 : f32 to vector<8x96xf32>
    %32 = arith.addf %31, %30 : vector<8x96xf32>
    %33 = arith.divf %31, %32 : vector<8x96xf32>
    %34 = vector.extract_strided_slice %22 {offsets = [0, 96], sizes = [8, 32], strides = [1, 1]} : vector<8x128xf32> to vector<8x32xf32>
    %35 = math.tanh %34 : vector<8x32xf32>
    %36 = vector.extract_strided_slice %27 {offsets = [0, 0], sizes = [8, 96], strides = [1, 1]} : vector<8x128xf32> to vector<8x96xf32>
    %37 = arith.negf %36 : vector<8x96xf32>
    %38 = math.exp %37 : vector<8x96xf32>
    %cst_25 = arith.constant 1.000000e+00 : f32
    %39 = vector.broadcast %cst_25 : f32 to vector<8x96xf32>
    %40 = arith.addf %39, %38 : vector<8x96xf32>
    %41 = arith.divf %39, %40 : vector<8x96xf32>
    %42 = vector.extract_strided_slice %27 {offsets = [0, 96], sizes = [8, 32], strides = [1, 1]} : vector<8x128xf32> to vector<8x32xf32>
    %43 = math.tanh %42 : vector<8x32xf32>
    %44 = vector.extract_strided_slice %33 {offsets = [0, 32], sizes = [8, 32], strides = [1, 1]} : vector<8x96xf32> to vector<8x32xf32>
    %45 = arith.mulf %44, %17 : vector<8x32xf32>
    %46 = vector.extract_strided_slice %33 {offsets = [0, 0], sizes = [8, 32], strides = [1, 1]} : vector<8x96xf32> to vector<8x32xf32>
    %47 = arith.mulf %46, %35 : vector<8x32xf32>
    %48 = arith.addf %45, %47 : vector<8x32xf32>
    %49 = vector.extract_strided_slice %41 {offsets = [0, 32], sizes = [8, 32], strides = [1, 1]} : vector<8x96xf32> to vector<8x32xf32>
    %50 = arith.mulf %49, %17 : vector<8x32xf32>
    %51 = vector.extract_strided_slice %41 {offsets = [0, 0], sizes = [8, 32], strides = [1, 1]} : vector<8x96xf32> to vector<8x32xf32>
    %52 = arith.mulf %51, %43 : vector<8x32xf32>
    %53 = arith.addf %50, %52 : vector<8x32xf32>
    %54 = vector.extract_strided_slice %33 {offsets = [0, 64], sizes = [8, 32], strides = [1, 1]} : vector<8x96xf32> to vector<8x32xf32>
    %55 = math.tanh %48 : vector<8x32xf32>
    %56 = arith.mulf %54, %55 : vector<8x32xf32>
    %57 = vector.extract_strided_slice %41 {offsets = [0, 64], sizes = [8, 32], strides = [1, 1]} : vector<8x96xf32> to vector<8x32xf32>
    %58 = math.tanh %53 : vector<8x32xf32>
    %59 = arith.mulf %57, %58 : vector<8x32xf32>
    %c0_26 = arith.constant 0 : index
    %c0_27 = arith.constant 0 : index
    %c0_28 = arith.constant 0 : index
    %60 = vector.load %arg10[%c0_26, %c0_27, %c0_28] : memref<8x8x32xf32, #tpu.memory_space<vmem>>, vector<1x8x32xf32>
    %61 = vector.shape_cast %60 : vector<1x8x32xf32> to vector<8x32xf32>
    %62 = vector.shape_cast %56 : vector<8x32xf32> to vector<1x8x32xf32>
    tpu.vector_store %arg10[%c0_26, %c0_27, %c0_28], %62 {strides = array<i32>} : memref<8x8x32xf32, #tpu.memory_space<vmem>>, vector<1x8x32xf32>,
    %c7_29 = arith.constant 7 : index
    %c0_30 = arith.constant 0 : index
    %c0_31 = arith.constant 0 : index
    %63 = vector.load %arg11[%c7_29, %c0_30, %c0_31] : memref<8x8x32xf32, #tpu.memory_space<vmem>>, vector<1x8x32xf32>
    %64 = vector.shape_cast %63 : vector<1x8x32xf32> to vector<8x32xf32>
    %65 = vector.shape_cast %59 : vector<8x32xf32> to vector<1x8x32xf32>
    tpu.vector_store %arg11[%c7_29, %c0_30, %c0_31], %65 {strides = array<i32>} : memref<8x8x32xf32, #tpu.memory_space<vmem>>, vector<1x8x32xf32>,
    %c1 = arith.constant 1 : index
    %c0_32 = arith.constant 0 : index
    %c0_33 = arith.constant 0 : index
    %66 = vector.load %arg8[%c1, %c0_32, %c0_33] : memref<8x8x128xbf16, #tpu.memory_space<vmem>>, vector<1x8x128xbf16>
    %67 = vector.shape_cast %66 : vector<1x8x128xbf16> to vector<8x128xbf16>
    %68 = arith.extf %67 : vector<8x128xbf16> to vector<8x128xf32>
    %cst_34 = arith.constant dense<0.000000e+00> : vector<8x128xf32>
    %69 = tpu.matmul %56, %15, %cst_34 {dimension_numbers = #tpu.dot_dimension_numbers<[1], [0], [0], [1], [0, 0, 1, 1], [], []>} : vector<8x32xf32>, vector<32x128xf32>, vector<8x128xf32> -> vector<8x128xf32>
    %70 = arith.addf %68, %69 : vector<8x128xf32>
    %c6 = arith.constant 6 : index
    %c0_35 = arith.constant 0 : index
    %c0_36 = arith.constant 0 : index
    %71 = vector.load %arg9[%c6, %c0_35, %c0_36] : memref<8x8x128xbf16, #tpu.memory_space<vmem>>, vector<1x8x128xbf16>
    %72 = vector.shape_cast %71 : vector<1x8x128xbf16> to vector<8x128xbf16>
    %73 = arith.extf %72 : vector<8x128xbf16> to vector<8x128xf32>
    %cst_37 = arith.constant dense<0.000000e+00> : vector<8x128xf32>
    %74 = tpu.matmul %59, %16, %cst_37 {dimension_numbers = #tpu.dot_dimension_numbers<[1], [0], [0], [1], [0, 0, 1, 1], [], []>} : vector<8x32xf32>, vector<32x128xf32>, vector<8x128xf32> -> vector<8x128xf32>
    %75 = arith.addf %73, %74 : vector<8x128xf32>
    %76 = vector.extract_strided_slice %70 {offsets = [0, 0], sizes = [8, 96], strides = [1, 1]} : vector<8x128xf32> to vector<8x96xf32>
    %77 = arith.negf %76 : vector<8x96xf32>
    %78 = math.exp %77 : vector<8x96xf32>
    %cst_38 = arith.constant 1.000000e+00 : f32
    %79 = vector.broadcast %cst_38 : f32 to vector<8x96xf32>
    %80 = arith.addf %79, %78 : vector<8x96xf32>
    %81 = arith.divf %79, %80 : vector<8x96xf32>
    %82 = vector.extract_strided_slice %70 {offsets = [0, 96], sizes = [8, 32], strides = [1, 1]} : vector<8x128xf32> to vector<8x32xf32>
    %83 = math.tanh %82 : vector<8x32xf32>
    %84 = vector.extract_strided_slice %75 {offsets = [0, 0], sizes = [8, 96], strides = [1, 1]} : vector<8x128xf32> to vector<8x96xf32>
    %85 = arith.negf %84 : vector<8x96xf32>
    %86 = math.exp %85 : vector<8x96xf32>
    %cst_39 = arith.constant 1.000000e+00 : f32
    %87 = vector.broadcast %cst_39 : f32 to vector<8x96xf32>
    %88 = arith.addf %87, %86 : vector<8x96xf32>
    %89 = arith.divf %87, %88 : vector<8x96xf32>
    %90 = vector.extract_strided_slice %75 {offsets = [0, 96], sizes = [8, 32], strides = [1, 1]} : vector<8x128xf32> to vector<8x32xf32>
    %91 = math.tanh %90 : vector<8x32xf32>
    %92 = vector.extract_strided_slice %81 {offsets = [0, 32], sizes = [8, 32], strides = [1, 1]} : vector<8x96xf32> to vector<8x32xf32>
    %93 = arith.mulf %92, %48 : vector<8x32xf32>
    %94 = vector.extract_strided_slice %81 {offsets = [0, 0], sizes = [8, 32], strides = [1, 1]} : vector<8x96xf32> to vector<8x32xf32>
    %95 = arith.mulf %94, %83 : vector<8x32xf32>
    %96 = arith.addf %93, %95 : vector<8x32xf32>
    %97 = vector.extract_strided_slice %89 {offsets = [0, 32], sizes = [8, 32], strides = [1, 1]} : vector<8x96xf32> to vector<8x32xf32>
    %98 = arith.mulf %97, %53 : vector<8x32xf32>
    %99 = vector.extract_strided_slice %89 {offsets = [0, 0], sizes = [8, 32], strides = [1, 1]} : vector<8x96xf32> to vector<8x32xf32>
    %100 = arith.mulf %99, %91 : vector<8x32xf32>
    %101 = arith.addf %98, %100 : vector<8x32xf32>
    %102 = vector.extract_strided_slice %81 {offsets = [0, 64], sizes = [8, 32], strides = [1, 1]} : vector<8x96xf32> to vector<8x32xf32>
    %103 = math.tanh %96 : vector<8x32xf32>
    %104 = arith.mulf %102, %103 : vector<8x32xf32>
    %105 = vector.extract_strided_slice %89 {offsets = [0, 64], sizes = [8, 32], strides = [1, 1]} : vector<8x96xf32> to vector<8x32xf32>
    %106 = math.tanh %101 : vector<8x32xf32>
    %107 = arith.mulf %105, %106 : vector<8x32xf32>
    %c1_40 = arith.constant 1 : index
    %c0_41 = arith.constant 0 : index
    %c0_42 = arith.constant 0 : index
    %108 = vector.load %arg10[%c1_40, %c0_41, %c0_42] : memref<8x8x32xf32, #tpu.memory_space<vmem>>, vector<1x8x32xf32>
    %109 = vector.shape_cast %108 : vector<1x8x32xf32> to vector<8x32xf32>
    %110 = vector.shape_cast %104 : vector<8x32xf32> to vector<1x8x32xf32>
    tpu.vector_store %arg10[%c1_40, %c0_41, %c0_42], %110 {strides = array<i32>} : memref<8x8x32xf32, #tpu.memory_space<vmem>>, vector<1x8x32xf32>,
    %c6_43 = arith.constant 6 : index
    %c0_44 = arith.constant 0 : index
    %c0_45 = arith.constant 0 : index
    %111 = vector.load %arg11[%c6_43, %c0_44, %c0_45] : memref<8x8x32xf32, #tpu.memory_space<vmem>>, vector<1x8x32xf32>
    %112 = vector.shape_cast %111 : vector<1x8x32xf32> to vector<8x32xf32>
    %113 = vector.shape_cast %107 : vector<8x32xf32> to vector<1x8x32xf32>
    tpu.vector_store %arg11[%c6_43, %c0_44, %c0_45], %113 {strides = array<i32>} : memref<8x8x32xf32, #tpu.memory_space<vmem>>, vector<1x8x32xf32>,
    %c2 = arith.constant 2 : index
    %c0_46 = arith.constant 0 : index
    %c0_47 = arith.constant 0 : index
    %114 = vector.load %arg8[%c2, %c0_46, %c0_47] : memref<8x8x128xbf16, #tpu.memory_space<vmem>>, vector<1x8x128xbf16>
    %115 = vector.shape_cast %114 : vector<1x8x128xbf16> to vector<8x128xbf16>
    %116 = arith.extf %115 : vector<8x128xbf16> to vector<8x128xf32>
    %cst_48 = arith.constant dense<0.000000e+00> : vector<8x128xf32>
    %117 = tpu.matmul %104, %15, %cst_48 {dimension_numbers = #tpu.dot_dimension_numbers<[1], [0], [0], [1], [0, 0, 1, 1], [], []>} : vector<8x32xf32>, vector<32x128xf32>, vector<8x128xf32> -> vector<8x128xf32>
    %118 = arith.addf %116, %117 : vector<8x128xf32>
    %c5 = arith.constant 5 : index
    %c0_49 = arith.constant 0 : index
    %c0_50 = arith.constant 0 : index
    %119 = vector.load %arg9[%c5, %c0_49, %c0_50] : memref<8x8x128xbf16, #tpu.memory_space<vmem>>, vector<1x8x128xbf16>
    %120 = vector.shape_cast %119 : vector<1x8x128xbf16> to vector<8x128xbf16>
    %121 = arith.extf %120 : vector<8x128xbf16> to vector<8x128xf32>
    %cst_51 = arith.constant dense<0.000000e+00> : vector<8x128xf32>
    %122 = tpu.matmul %107, %16, %cst_51 {dimension_numbers = #tpu.dot_dimension_numbers<[1], [0], [0], [1], [0, 0, 1, 1], [], []>} : vector<8x32xf32>, vector<32x128xf32>, vector<8x128xf32> -> vector<8x128xf32>
    %123 = arith.addf %121, %122 : vector<8x128xf32>
    %124 = vector.extract_strided_slice %118 {offsets = [0, 0], sizes = [8, 96], strides = [1, 1]} : vector<8x128xf32> to vector<8x96xf32>
    %125 = arith.negf %124 : vector<8x96xf32>
    %126 = math.exp %125 : vector<8x96xf32>
    %cst_52 = arith.constant 1.000000e+00 : f32
    %127 = vector.broadcast %cst_52 : f32 to vector<8x96xf32>
    %128 = arith.addf %127, %126 : vector<8x96xf32>
    %129 = arith.divf %127, %128 : vector<8x96xf32>
    %130 = vector.extract_strided_slice %118 {offsets = [0, 96], sizes = [8, 32], strides = [1, 1]} : vector<8x128xf32> to vector<8x32xf32>
    %131 = math.tanh %130 : vector<8x32xf32>
    %132 = vector.extract_strided_slice %123 {offsets = [0, 0], sizes = [8, 96], strides = [1, 1]} : vector<8x128xf32> to vector<8x96xf32>
    %133 = arith.negf %132 : vector<8x96xf32>
    %134 = math.exp %133 : vector<8x96xf32>
    %cst_53 = arith.constant 1.000000e+00 : f32
    %135 = vector.broadcast %cst_53 : f32 to vector<8x96xf32>
    %136 = arith.addf %135, %134 : vector<8x96xf32>
    %137 = arith.divf %135, %136 : vector<8x96xf32>
    %138 = vector.extract_strided_slice %123 {offsets = [0, 96], sizes = [8, 32], strides = [1, 1]} : vector<8x128xf32> to vector<8x32xf32>
    %139 = math.tanh %138 : vector<8x32xf32>
    %140 = vector.extract_strided_slice %129 {offsets = [0, 32], sizes = [8, 32], strides = [1, 1]} : vector<8x96xf32> to vector<8x32xf32>
    %141 = arith.mulf %140, %96 : vector<8x32xf32>
    %142 = vector.extract_strided_slice %129 {offsets = [0, 0], sizes = [8, 32], strides = [1, 1]} : vector<8x96xf32> to vector<8x32xf32>
    %143 = arith.mulf %142, %131 : vector<8x32xf32>
    %144 = arith.addf %141, %143 : vector<8x32xf32>
    %145 = vector.extract_strided_slice %137 {offsets = [0, 32], sizes = [8, 32], strides = [1, 1]} : vector<8x96xf32> to vector<8x32xf32>
    %146 = arith.mulf %145, %101 : vector<8x32xf32>
    %147 = vector.extract_strided_slice %137 {offsets = [0, 0], sizes = [8, 32], strides = [1, 1]} : vector<8x96xf32> to vector<8x32xf32>
    %148 = arith.mulf %147, %139 : vector<8x32xf32>
    %149 = arith.addf %146, %148 : vector<8x32xf32>
    %150 = vector.extract_strided_slice %129 {offsets = [0, 64], sizes = [8, 32], strides = [1, 1]} : vector<8x96xf32> to vector<8x32xf32>
    %151 = math.tanh %144 : vector<8x32xf32>
    %152 = arith.mulf %150, %151 : vector<8x32xf32>
    %153 = vector.extract_strided_slice %137 {offsets = [0, 64], sizes = [8, 32], strides = [1, 1]} : vector<8x96xf32> to vector<8x32xf32>
    %154 = math.tanh %149 : vector<8x32xf32>
    %155 = arith.mulf %153, %154 : vector<8x32xf32>
    %c2_54 = arith.constant 2 : index
    %c0_55 = arith.constant 0 : index
    %c0_56 = arith.constant 0 : index
    %156 = vector.load %arg10[%c2_54, %c0_55, %c0_56] : memref<8x8x32xf32, #tpu.memory_space<vmem>>, vector<1x8x32xf32>
    %157 = vector.shape_cast %156 : vector<1x8x32xf32> to vector<8x32xf32>
    %158 = vector.shape_cast %152 : vector<8x32xf32> to vector<1x8x32xf32>
    tpu.vector_store %arg10[%c2_54, %c0_55, %c0_56], %158 {strides = array<i32>} : memref<8x8x32xf32, #tpu.memory_space<vmem>>, vector<1x8x32xf32>,
    %c5_57 = arith.constant 5 : index
    %c0_58 = arith.constant 0 : index
    %c0_59 = arith.constant 0 : index
    %159 = vector.load %arg11[%c5_57, %c0_58, %c0_59] : memref<8x8x32xf32, #tpu.memory_space<vmem>>, vector<1x8x32xf32>
    %160 = vector.shape_cast %159 : vector<1x8x32xf32> to vector<8x32xf32>
    %161 = vector.shape_cast %155 : vector<8x32xf32> to vector<1x8x32xf32>
    tpu.vector_store %arg11[%c5_57, %c0_58, %c0_59], %161 {strides = array<i32>} : memref<8x8x32xf32, #tpu.memory_space<vmem>>, vector<1x8x32xf32>,
    %c3 = arith.constant 3 : index
    %c0_60 = arith.constant 0 : index
    %c0_61 = arith.constant 0 : index
    %162 = vector.load %arg8[%c3, %c0_60, %c0_61] : memref<8x8x128xbf16, #tpu.memory_space<vmem>>, vector<1x8x128xbf16>
    %163 = vector.shape_cast %162 : vector<1x8x128xbf16> to vector<8x128xbf16>
    %164 = arith.extf %163 : vector<8x128xbf16> to vector<8x128xf32>
    %cst_62 = arith.constant dense<0.000000e+00> : vector<8x128xf32>
    %165 = tpu.matmul %152, %15, %cst_62 {dimension_numbers = #tpu.dot_dimension_numbers<[1], [0], [0], [1], [0, 0, 1, 1], [], []>} : vector<8x32xf32>, vector<32x128xf32>, vector<8x128xf32> -> vector<8x128xf32>
    %166 = arith.addf %164, %165 : vector<8x128xf32>
    %c4 = arith.constant 4 : index
    %c0_63 = arith.constant 0 : index
    %c0_64 = arith.constant 0 : index
    %167 = vector.load %arg9[%c4, %c0_63, %c0_64] : memref<8x8x128xbf16, #tpu.memory_space<vmem>>, vector<1x8x128xbf16>
    %168 = vector.shape_cast %167 : vector<1x8x128xbf16> to vector<8x128xbf16>
    %169 = arith.extf %168 : vector<8x128xbf16> to vector<8x128xf32>
    %cst_65 = arith.constant dense<0.000000e+00> : vector<8x128xf32>
    %170 = tpu.matmul %155, %16, %cst_65 {dimension_numbers = #tpu.dot_dimension_numbers<[1], [0], [0], [1], [0, 0, 1, 1], [], []>} : vector<8x32xf32>, vector<32x128xf32>, vector<8x128xf32> -> vector<8x128xf32>
    %171 = arith.addf %169, %170 : vector<8x128xf32>
    %172 = vector.extract_strided_slice %166 {offsets = [0, 0], sizes = [8, 96], strides = [1, 1]} : vector<8x128xf32> to vector<8x96xf32>
    %173 = arith.negf %172 : vector<8x96xf32>
    %174 = math.exp %173 : vector<8x96xf32>
    %cst_66 = arith.constant 1.000000e+00 : f32
    %175 = vector.broadcast %cst_66 : f32 to vector<8x96xf32>
    %176 = arith.addf %175, %174 : vector<8x96xf32>
    %177 = arith.divf %175, %176 : vector<8x96xf32>
    %178 = vector.extract_strided_slice %166 {offsets = [0, 96], sizes = [8, 32], strides = [1, 1]} : vector<8x128xf32> to vector<8x32xf32>
    %179 = math.tanh %178 : vector<8x32xf32>
    %180 = vector.extract_strided_slice %171 {offsets = [0, 0], sizes = [8, 96], strides = [1, 1]} : vector<8x128xf32> to vector<8x96xf32>
    %181 = arith.negf %180 : vector<8x96xf32>
    %182 = math.exp %181 : vector<8x96xf32>
    %cst_67 = arith.constant 1.000000e+00 : f32
    %183 = vector.broadcast %cst_67 : f32 to vector<8x96xf32>
    %184 = arith.addf %183, %182 : vector<8x96xf32>
    %185 = arith.divf %183, %184 : vector<8x96xf32>
    %186 = vector.extract_strided_slice %171 {offsets = [0, 96], sizes = [8, 32], strides = [1, 1]} : vector<8x128xf32> to vector<8x32xf32>
    %187 = math.tanh %186 : vector<8x32xf32>
    %188 = vector.extract_strided_slice %177 {offsets = [0, 32], sizes = [8, 32], strides = [1, 1]} : vector<8x96xf32> to vector<8x32xf32>
    %189 = arith.mulf %188, %144 : vector<8x32xf32>
    %190 = vector.extract_strided_slice %177 {offsets = [0, 0], sizes = [8, 32], strides = [1, 1]} : vector<8x96xf32> to vector<8x32xf32>
    %191 = arith.mulf %190, %179 : vector<8x32xf32>
    %192 = arith.addf %189, %191 : vector<8x32xf32>
    %193 = vector.extract_strided_slice %185 {offsets = [0, 32], sizes = [8, 32], strides = [1, 1]} : vector<8x96xf32> to vector<8x32xf32>
    %194 = arith.mulf %193, %149 : vector<8x32xf32>
    %195 = vector.extract_strided_slice %185 {offsets = [0, 0], sizes = [8, 32], strides = [1, 1]} : vector<8x96xf32> to vector<8x32xf32>
    %196 = arith.mulf %195, %187 : vector<8x32xf32>
    %197 = arith.addf %194, %196 : vector<8x32xf32>
    %198 = vector.extract_strided_slice %177 {offsets = [0, 64], sizes = [8, 32], strides = [1, 1]} : vector<8x96xf32> to vector<8x32xf32>
    %199 = math.tanh %192 : vector<8x32xf32>
    %200 = arith.mulf %198, %199 : vector<8x32xf32>
    %201 = vector.extract_strided_slice %185 {offsets = [0, 64], sizes = [8, 32], strides = [1, 1]} : vector<8x96xf32> to vector<8x32xf32>
    %202 = math.tanh %197 : vector<8x32xf32>
    %203 = arith.mulf %201, %202 : vector<8x32xf32>
    %c3_68 = arith.constant 3 : index
    %c0_69 = arith.constant 0 : index
    %c0_70 = arith.constant 0 : index
    %204 = vector.load %arg10[%c3_68, %c0_69, %c0_70] : memref<8x8x32xf32, #tpu.memory_space<vmem>>, vector<1x8x32xf32>
    %205 = vector.shape_cast %204 : vector<1x8x32xf32> to vector<8x32xf32>
    %206 = vector.shape_cast %200 : vector<8x32xf32> to vector<1x8x32xf32>
    tpu.vector_store %arg10[%c3_68, %c0_69, %c0_70], %206 {strides = array<i32>} : memref<8x8x32xf32, #tpu.memory_space<vmem>>, vector<1x8x32xf32>,
    %c4_71 = arith.constant 4 : index
    %c0_72 = arith.constant 0 : index
    %c0_73 = arith.constant 0 : index
    %207 = vector.load %arg11[%c4_71, %c0_72, %c0_73] : memref<8x8x32xf32, #tpu.memory_space<vmem>>, vector<1x8x32xf32>
    %208 = vector.shape_cast %207 : vector<1x8x32xf32> to vector<8x32xf32>
    %209 = vector.shape_cast %203 : vector<8x32xf32> to vector<1x8x32xf32>
    tpu.vector_store %arg11[%c4_71, %c0_72, %c0_73], %209 {strides = array<i32>} : memref<8x8x32xf32, #tpu.memory_space<vmem>>, vector<1x8x32xf32>,
    %c4_74 = arith.constant 4 : index
    %c0_75 = arith.constant 0 : index
    %c0_76 = arith.constant 0 : index
    %210 = vector.load %arg8[%c4_74, %c0_75, %c0_76] : memref<8x8x128xbf16, #tpu.memory_space<vmem>>, vector<1x8x128xbf16>
    %211 = vector.shape_cast %210 : vector<1x8x128xbf16> to vector<8x128xbf16>
    %212 = arith.extf %211 : vector<8x128xbf16> to vector<8x128xf32>
    %cst_77 = arith.constant dense<0.000000e+00> : vector<8x128xf32>
    %213 = tpu.matmul %200, %15, %cst_77 {dimension_numbers = #tpu.dot_dimension_numbers<[1], [0], [0], [1], [0, 0, 1, 1], [], []>} : vector<8x32xf32>, vector<32x128xf32>, vector<8x128xf32> -> vector<8x128xf32>
    %214 = arith.addf %212, %213 : vector<8x128xf32>
    %c3_78 = arith.constant 3 : index
    %c0_79 = arith.constant 0 : index
    %c0_80 = arith.constant 0 : index
    %215 = vector.load %arg9[%c3_78, %c0_79, %c0_80] : memref<8x8x128xbf16, #tpu.memory_space<vmem>>, vector<1x8x128xbf16>
    %216 = vector.shape_cast %215 : vector<1x8x128xbf16> to vector<8x128xbf16>
    %217 = arith.extf %216 : vector<8x128xbf16> to vector<8x128xf32>
    %cst_81 = arith.constant dense<0.000000e+00> : vector<8x128xf32>
    %218 = tpu.matmul %203, %16, %cst_81 {dimension_numbers = #tpu.dot_dimension_numbers<[1], [0], [0], [1], [0, 0, 1, 1], [], []>} : vector<8x32xf32>, vector<32x128xf32>, vector<8x128xf32> -> vector<8x128xf32>
    %219 = arith.addf %217, %218 : vector<8x128xf32>
    %220 = vector.extract_strided_slice %214 {offsets = [0, 0], sizes = [8, 96], strides = [1, 1]} : vector<8x128xf32> to vector<8x96xf32>
    %221 = arith.negf %220 : vector<8x96xf32>
    %222 = math.exp %221 : vector<8x96xf32>
    %cst_82 = arith.constant 1.000000e+00 : f32
    %223 = vector.broadcast %cst_82 : f32 to vector<8x96xf32>
    %224 = arith.addf %223, %222 : vector<8x96xf32>
    %225 = arith.divf %223, %224 : vector<8x96xf32>
    %226 = vector.extract_strided_slice %214 {offsets = [0, 96], sizes = [8, 32], strides = [1, 1]} : vector<8x128xf32> to vector<8x32xf32>
    %227 = math.tanh %226 : vector<8x32xf32>
    %228 = vector.extract_strided_slice %219 {offsets = [0, 0], sizes = [8, 96], strides = [1, 1]} : vector<8x128xf32> to vector<8x96xf32>
    %229 = arith.negf %228 : vector<8x96xf32>
    %230 = math.exp %229 : vector<8x96xf32>
    %cst_83 = arith.constant 1.000000e+00 : f32
    %231 = vector.broadcast %cst_83 : f32 to vector<8x96xf32>
    %232 = arith.addf %231, %230 : vector<8x96xf32>
    %233 = arith.divf %231, %232 : vector<8x96xf32>
    %234 = vector.extract_strided_slice %219 {offsets = [0, 96], sizes = [8, 32], strides = [1, 1]} : vector<8x128xf32> to vector<8x32xf32>
    %235 = math.tanh %234 : vector<8x32xf32>
    %236 = vector.extract_strided_slice %225 {offsets = [0, 32], sizes = [8, 32], strides = [1, 1]} : vector<8x96xf32> to vector<8x32xf32>
    %237 = arith.mulf %236, %192 : vector<8x32xf32>
    %238 = vector.extract_strided_slice %225 {offsets = [0, 0], sizes = [8, 32], strides = [1, 1]} : vector<8x96xf32> to vector<8x32xf32>
    %239 = arith.mulf %238, %227 : vector<8x32xf32>
    %240 = arith.addf %237, %239 : vector<8x32xf32>
    %241 = vector.extract_strided_slice %233 {offsets = [0, 32], sizes = [8, 32], strides = [1, 1]} : vector<8x96xf32> to vector<8x32xf32>
    %242 = arith.mulf %241, %197 : vector<8x32xf32>
    %243 = vector.extract_strided_slice %233 {offsets = [0, 0], sizes = [8, 32], strides = [1, 1]} : vector<8x96xf32> to vector<8x32xf32>
    %244 = arith.mulf %243, %235 : vector<8x32xf32>
    %245 = arith.addf %242, %244 : vector<8x32xf32>
    %246 = vector.extract_strided_slice %225 {offsets = [0, 64], sizes = [8, 32], strides = [1, 1]} : vector<8x96xf32> to vector<8x32xf32>
    %247 = math.tanh %240 : vector<8x32xf32>
    %248 = arith.mulf %246, %247 : vector<8x32xf32>
    %249 = vector.extract_strided_slice %233 {offsets = [0, 64], sizes = [8, 32], strides = [1, 1]} : vector<8x96xf32> to vector<8x32xf32>
    %250 = math.tanh %245 : vector<8x32xf32>
    %251 = arith.mulf %249, %250 : vector<8x32xf32>
    %c4_84 = arith.constant 4 : index
    %c0_85 = arith.constant 0 : index
    %c0_86 = arith.constant 0 : index
    %252 = vector.load %arg10[%c4_84, %c0_85, %c0_86] : memref<8x8x32xf32, #tpu.memory_space<vmem>>, vector<1x8x32xf32>
    %253 = vector.shape_cast %252 : vector<1x8x32xf32> to vector<8x32xf32>
    %254 = vector.shape_cast %248 : vector<8x32xf32> to vector<1x8x32xf32>
    tpu.vector_store %arg10[%c4_84, %c0_85, %c0_86], %254 {strides = array<i32>} : memref<8x8x32xf32, #tpu.memory_space<vmem>>, vector<1x8x32xf32>,
    %c3_87 = arith.constant 3 : index
    %c0_88 = arith.constant 0 : index
    %c0_89 = arith.constant 0 : index
    %255 = vector.load %arg11[%c3_87, %c0_88, %c0_89] : memref<8x8x32xf32, #tpu.memory_space<vmem>>, vector<1x8x32xf32>
    %256 = vector.shape_cast %255 : vector<1x8x32xf32> to vector<8x32xf32>
    %257 = vector.shape_cast %251 : vector<8x32xf32> to vector<1x8x32xf32>
    tpu.vector_store %arg11[%c3_87, %c0_88, %c0_89], %257 {strides = array<i32>} : memref<8x8x32xf32, #tpu.memory_space<vmem>>, vector<1x8x32xf32>,
    %c5_90 = arith.constant 5 : index
    %c0_91 = arith.constant 0 : index
    %c0_92 = arith.constant 0 : index
    %258 = vector.load %arg8[%c5_90, %c0_91, %c0_92] : memref<8x8x128xbf16, #tpu.memory_space<vmem>>, vector<1x8x128xbf16>
    %259 = vector.shape_cast %258 : vector<1x8x128xbf16> to vector<8x128xbf16>
    %260 = arith.extf %259 : vector<8x128xbf16> to vector<8x128xf32>
    %cst_93 = arith.constant dense<0.000000e+00> : vector<8x128xf32>
    %261 = tpu.matmul %248, %15, %cst_93 {dimension_numbers = #tpu.dot_dimension_numbers<[1], [0], [0], [1], [0, 0, 1, 1], [], []>} : vector<8x32xf32>, vector<32x128xf32>, vector<8x128xf32> -> vector<8x128xf32>
    %262 = arith.addf %260, %261 : vector<8x128xf32>
    %c2_94 = arith.constant 2 : index
    %c0_95 = arith.constant 0 : index
    %c0_96 = arith.constant 0 : index
    %263 = vector.load %arg9[%c2_94, %c0_95, %c0_96] : memref<8x8x128xbf16, #tpu.memory_space<vmem>>, vector<1x8x128xbf16>
    %264 = vector.shape_cast %263 : vector<1x8x128xbf16> to vector<8x128xbf16>
    %265 = arith.extf %264 : vector<8x128xbf16> to vector<8x128xf32>
    %cst_97 = arith.constant dense<0.000000e+00> : vector<8x128xf32>
    %266 = tpu.matmul %251, %16, %cst_97 {dimension_numbers = #tpu.dot_dimension_numbers<[1], [0], [0], [1], [0, 0, 1, 1], [], []>} : vector<8x32xf32>, vector<32x128xf32>, vector<8x128xf32> -> vector<8x128xf32>
    %267 = arith.addf %265, %266 : vector<8x128xf32>
    %268 = vector.extract_strided_slice %262 {offsets = [0, 0], sizes = [8, 96], strides = [1, 1]} : vector<8x128xf32> to vector<8x96xf32>
    %269 = arith.negf %268 : vector<8x96xf32>
    %270 = math.exp %269 : vector<8x96xf32>
    %cst_98 = arith.constant 1.000000e+00 : f32
    %271 = vector.broadcast %cst_98 : f32 to vector<8x96xf32>
    %272 = arith.addf %271, %270 : vector<8x96xf32>
    %273 = arith.divf %271, %272 : vector<8x96xf32>
    %274 = vector.extract_strided_slice %262 {offsets = [0, 96], sizes = [8, 32], strides = [1, 1]} : vector<8x128xf32> to vector<8x32xf32>
    %275 = math.tanh %274 : vector<8x32xf32>
    %276 = vector.extract_strided_slice %267 {offsets = [0, 0], sizes = [8, 96], strides = [1, 1]} : vector<8x128xf32> to vector<8x96xf32>
    %277 = arith.negf %276 : vector<8x96xf32>
    %278 = math.exp %277 : vector<8x96xf32>
    %cst_99 = arith.constant 1.000000e+00 : f32
    %279 = vector.broadcast %cst_99 : f32 to vector<8x96xf32>
    %280 = arith.addf %279, %278 : vector<8x96xf32>
    %281 = arith.divf %279, %280 : vector<8x96xf32>
    %282 = vector.extract_strided_slice %267 {offsets = [0, 96], sizes = [8, 32], strides = [1, 1]} : vector<8x128xf32> to vector<8x32xf32>
    %283 = math.tanh %282 : vector<8x32xf32>
    %284 = vector.extract_strided_slice %273 {offsets = [0, 32], sizes = [8, 32], strides = [1, 1]} : vector<8x96xf32> to vector<8x32xf32>
    %285 = arith.mulf %284, %240 : vector<8x32xf32>
    %286 = vector.extract_strided_slice %273 {offsets = [0, 0], sizes = [8, 32], strides = [1, 1]} : vector<8x96xf32> to vector<8x32xf32>
    %287 = arith.mulf %286, %275 : vector<8x32xf32>
    %288 = arith.addf %285, %287 : vector<8x32xf32>
    %289 = vector.extract_strided_slice %281 {offsets = [0, 32], sizes = [8, 32], strides = [1, 1]} : vector<8x96xf32> to vector<8x32xf32>
    %290 = arith.mulf %289, %245 : vector<8x32xf32>
    %291 = vector.extract_strided_slice %281 {offsets = [0, 0], sizes = [8, 32], strides = [1, 1]} : vector<8x96xf32> to vector<8x32xf32>
    %292 = arith.mulf %291, %283 : vector<8x32xf32>
    %293 = arith.addf %290, %292 : vector<8x32xf32>
    %294 = vector.extract_strided_slice %273 {offsets = [0, 64], sizes = [8, 32], strides = [1, 1]} : vector<8x96xf32> to vector<8x32xf32>
    %295 = math.tanh %288 : vector<8x32xf32>
    %296 = arith.mulf %294, %295 : vector<8x32xf32>
    %297 = vector.extract_strided_slice %281 {offsets = [0, 64], sizes = [8, 32], strides = [1, 1]} : vector<8x96xf32> to vector<8x32xf32>
    %298 = math.tanh %293 : vector<8x32xf32>
    %299 = arith.mulf %297, %298 : vector<8x32xf32>
    %c5_100 = arith.constant 5 : index
    %c0_101 = arith.constant 0 : index
    %c0_102 = arith.constant 0 : index
    %300 = vector.load %arg10[%c5_100, %c0_101, %c0_102] : memref<8x8x32xf32, #tpu.memory_space<vmem>>, vector<1x8x32xf32>
    %301 = vector.shape_cast %300 : vector<1x8x32xf32> to vector<8x32xf32>
    %302 = vector.shape_cast %296 : vector<8x32xf32> to vector<1x8x32xf32>
    tpu.vector_store %arg10[%c5_100, %c0_101, %c0_102], %302 {strides = array<i32>} : memref<8x8x32xf32, #tpu.memory_space<vmem>>, vector<1x8x32xf32>,
    %c2_103 = arith.constant 2 : index
    %c0_104 = arith.constant 0 : index
    %c0_105 = arith.constant 0 : index
    %303 = vector.load %arg11[%c2_103, %c0_104, %c0_105] : memref<8x8x32xf32, #tpu.memory_space<vmem>>, vector<1x8x32xf32>
    %304 = vector.shape_cast %303 : vector<1x8x32xf32> to vector<8x32xf32>
    %305 = vector.shape_cast %299 : vector<8x32xf32> to vector<1x8x32xf32>
    tpu.vector_store %arg11[%c2_103, %c0_104, %c0_105], %305 {strides = array<i32>} : memref<8x8x32xf32, #tpu.memory_space<vmem>>, vector<1x8x32xf32>,
    %c6_106 = arith.constant 6 : index
    %c0_107 = arith.constant 0 : index
    %c0_108 = arith.constant 0 : index
    %306 = vector.load %arg8[%c6_106, %c0_107, %c0_108] : memref<8x8x128xbf16, #tpu.memory_space<vmem>>, vector<1x8x128xbf16>
    %307 = vector.shape_cast %306 : vector<1x8x128xbf16> to vector<8x128xbf16>
    %308 = arith.extf %307 : vector<8x128xbf16> to vector<8x128xf32>
    %cst_109 = arith.constant dense<0.000000e+00> : vector<8x128xf32>
    %309 = tpu.matmul %296, %15, %cst_109 {dimension_numbers = #tpu.dot_dimension_numbers<[1], [0], [0], [1], [0, 0, 1, 1], [], []>} : vector<8x32xf32>, vector<32x128xf32>, vector<8x128xf32> -> vector<8x128xf32>
    %310 = arith.addf %308, %309 : vector<8x128xf32>
    %c1_110 = arith.constant 1 : index
    %c0_111 = arith.constant 0 : index
    %c0_112 = arith.constant 0 : index
    %311 = vector.load %arg9[%c1_110, %c0_111, %c0_112] : memref<8x8x128xbf16, #tpu.memory_space<vmem>>, vector<1x8x128xbf16>
    %312 = vector.shape_cast %311 : vector<1x8x128xbf16> to vector<8x128xbf16>
    %313 = arith.extf %312 : vector<8x128xbf16> to vector<8x128xf32>
    %cst_113 = arith.constant dense<0.000000e+00> : vector<8x128xf32>
    %314 = tpu.matmul %299, %16, %cst_113 {dimension_numbers = #tpu.dot_dimension_numbers<[1], [0], [0], [1], [0, 0, 1, 1], [], []>} : vector<8x32xf32>, vector<32x128xf32>, vector<8x128xf32> -> vector<8x128xf32>
    %315 = arith.addf %313, %314 : vector<8x128xf32>
    %316 = vector.extract_strided_slice %310 {offsets = [0, 0], sizes = [8, 96], strides = [1, 1]} : vector<8x128xf32> to vector<8x96xf32>
    %317 = arith.negf %316 : vector<8x96xf32>
    %318 = math.exp %317 : vector<8x96xf32>
    %cst_114 = arith.constant 1.000000e+00 : f32
    %319 = vector.broadcast %cst_114 : f32 to vector<8x96xf32>
    %320 = arith.addf %319, %318 : vector<8x96xf32>
    %321 = arith.divf %319, %320 : vector<8x96xf32>
    %322 = vector.extract_strided_slice %310 {offsets = [0, 96], sizes = [8, 32], strides = [1, 1]} : vector<8x128xf32> to vector<8x32xf32>
    %323 = math.tanh %322 : vector<8x32xf32>
    %324 = vector.extract_strided_slice %315 {offsets = [0, 0], sizes = [8, 96], strides = [1, 1]} : vector<8x128xf32> to vector<8x96xf32>
    %325 = arith.negf %324 : vector<8x96xf32>
    %326 = math.exp %325 : vector<8x96xf32>
    %cst_115 = arith.constant 1.000000e+00 : f32
    %327 = vector.broadcast %cst_115 : f32 to vector<8x96xf32>
    %328 = arith.addf %327, %326 : vector<8x96xf32>
    %329 = arith.divf %327, %328 : vector<8x96xf32>
    %330 = vector.extract_strided_slice %315 {offsets = [0, 96], sizes = [8, 32], strides = [1, 1]} : vector<8x128xf32> to vector<8x32xf32>
    %331 = math.tanh %330 : vector<8x32xf32>
    %332 = vector.extract_strided_slice %321 {offsets = [0, 32], sizes = [8, 32], strides = [1, 1]} : vector<8x96xf32> to vector<8x32xf32>
    %333 = arith.mulf %332, %288 : vector<8x32xf32>
    %334 = vector.extract_strided_slice %321 {offsets = [0, 0], sizes = [8, 32], strides = [1, 1]} : vector<8x96xf32> to vector<8x32xf32>
    %335 = arith.mulf %334, %323 : vector<8x32xf32>
    %336 = arith.addf %333, %335 : vector<8x32xf32>
    %337 = vector.extract_strided_slice %329 {offsets = [0, 32], sizes = [8, 32], strides = [1, 1]} : vector<8x96xf32> to vector<8x32xf32>
    %338 = arith.mulf %337, %293 : vector<8x32xf32>
    %339 = vector.extract_strided_slice %329 {offsets = [0, 0], sizes = [8, 32], strides = [1, 1]} : vector<8x96xf32> to vector<8x32xf32>
    %340 = arith.mulf %339, %331 : vector<8x32xf32>
    %341 = arith.addf %338, %340 : vector<8x32xf32>
    %342 = vector.extract_strided_slice %321 {offsets = [0, 64], sizes = [8, 32], strides = [1, 1]} : vector<8x96xf32> to vector<8x32xf32>
    %343 = math.tanh %336 : vector<8x32xf32>
    %344 = arith.mulf %342, %343 : vector<8x32xf32>
    %345 = vector.extract_strided_slice %329 {offsets = [0, 64], sizes = [8, 32], strides = [1, 1]} : vector<8x96xf32> to vector<8x32xf32>
    %346 = math.tanh %341 : vector<8x32xf32>
    %347 = arith.mulf %345, %346 : vector<8x32xf32>
    %c6_116 = arith.constant 6 : index
    %c0_117 = arith.constant 0 : index
    %c0_118 = arith.constant 0 : index
    %348 = vector.load %arg10[%c6_116, %c0_117, %c0_118] : memref<8x8x32xf32, #tpu.memory_space<vmem>>, vector<1x8x32xf32>
    %349 = vector.shape_cast %348 : vector<1x8x32xf32> to vector<8x32xf32>
    %350 = vector.shape_cast %344 : vector<8x32xf32> to vector<1x8x32xf32>
    tpu.vector_store %arg10[%c6_116, %c0_117, %c0_118], %350 {strides = array<i32>} : memref<8x8x32xf32, #tpu.memory_space<vmem>>, vector<1x8x32xf32>,
    %c1_119 = arith.constant 1 : index
    %c0_120 = arith.constant 0 : index
    %c0_121 = arith.constant 0 : index
    %351 = vector.load %arg11[%c1_119, %c0_120, %c0_121] : memref<8x8x32xf32, #tpu.memory_space<vmem>>, vector<1x8x32xf32>
    %352 = vector.shape_cast %351 : vector<1x8x32xf32> to vector<8x32xf32>
    %353 = vector.shape_cast %347 : vector<8x32xf32> to vector<1x8x32xf32>
    tpu.vector_store %arg11[%c1_119, %c0_120, %c0_121], %353 {strides = array<i32>} : memref<8x8x32xf32, #tpu.memory_space<vmem>>, vector<1x8x32xf32>,
    %c7_122 = arith.constant 7 : index
    %c0_123 = arith.constant 0 : index
    %c0_124 = arith.constant 0 : index
    %354 = vector.load %arg8[%c7_122, %c0_123, %c0_124] : memref<8x8x128xbf16, #tpu.memory_space<vmem>>, vector<1x8x128xbf16>
    %355 = vector.shape_cast %354 : vector<1x8x128xbf16> to vector<8x128xbf16>
    %356 = arith.extf %355 : vector<8x128xbf16> to vector<8x128xf32>
    %cst_125 = arith.constant dense<0.000000e+00> : vector<8x128xf32>
    %357 = tpu.matmul %344, %15, %cst_125 {dimension_numbers = #tpu.dot_dimension_numbers<[1], [0], [0], [1], [0, 0, 1, 1], [], []>} : vector<8x32xf32>, vector<32x128xf32>, vector<8x128xf32> -> vector<8x128xf32>
    %358 = arith.addf %356, %357 : vector<8x128xf32>
    %c0_126 = arith.constant 0 : index
    %c0_127 = arith.constant 0 : index
    %c0_128 = arith.constant 0 : index
    %359 = vector.load %arg9[%c0_126, %c0_127, %c0_128] : memref<8x8x128xbf16, #tpu.memory_space<vmem>>, vector<1x8x128xbf16>
    %360 = vector.shape_cast %359 : vector<1x8x128xbf16> to vector<8x128xbf16>
    %361 = arith.extf %360 : vector<8x128xbf16> to vector<8x128xf32>
    %cst_129 = arith.constant dense<0.000000e+00> : vector<8x128xf32>
    %362 = tpu.matmul %347, %16, %cst_129 {dimension_numbers = #tpu.dot_dimension_numbers<[1], [0], [0], [1], [0, 0, 1, 1], [], []>} : vector<8x32xf32>, vector<32x128xf32>, vector<8x128xf32> -> vector<8x128xf32>
    %363 = arith.addf %361, %362 : vector<8x128xf32>
    %364 = vector.extract_strided_slice %358 {offsets = [0, 0], sizes = [8, 96], strides = [1, 1]} : vector<8x128xf32> to vector<8x96xf32>
    %365 = arith.negf %364 : vector<8x96xf32>
    %366 = math.exp %365 : vector<8x96xf32>
    %cst_130 = arith.constant 1.000000e+00 : f32
    %367 = vector.broadcast %cst_130 : f32 to vector<8x96xf32>
    %368 = arith.addf %367, %366 : vector<8x96xf32>
    %369 = arith.divf %367, %368 : vector<8x96xf32>
    %370 = vector.extract_strided_slice %358 {offsets = [0, 96], sizes = [8, 32], strides = [1, 1]} : vector<8x128xf32> to vector<8x32xf32>
    %371 = math.tanh %370 : vector<8x32xf32>
    %372 = vector.extract_strided_slice %363 {offsets = [0, 0], sizes = [8, 96], strides = [1, 1]} : vector<8x128xf32> to vector<8x96xf32>
    %373 = arith.negf %372 : vector<8x96xf32>
    %374 = math.exp %373 : vector<8x96xf32>
    %cst_131 = arith.constant 1.000000e+00 : f32
    %375 = vector.broadcast %cst_131 : f32 to vector<8x96xf32>
    %376 = arith.addf %375, %374 : vector<8x96xf32>
    %377 = arith.divf %375, %376 : vector<8x96xf32>
    %378 = vector.extract_strided_slice %363 {offsets = [0, 96], sizes = [8, 32], strides = [1, 1]} : vector<8x128xf32> to vector<8x32xf32>
    %379 = math.tanh %378 : vector<8x32xf32>
    %380 = vector.extract_strided_slice %369 {offsets = [0, 32], sizes = [8, 32], strides = [1, 1]} : vector<8x96xf32> to vector<8x32xf32>
    %381 = arith.mulf %380, %336 : vector<8x32xf32>
    %382 = vector.extract_strided_slice %369 {offsets = [0, 0], sizes = [8, 32], strides = [1, 1]} : vector<8x96xf32> to vector<8x32xf32>
    %383 = arith.mulf %382, %371 : vector<8x32xf32>
    %384 = arith.addf %381, %383 : vector<8x32xf32>
    %385 = vector.extract_strided_slice %377 {offsets = [0, 32], sizes = [8, 32], strides = [1, 1]} : vector<8x96xf32> to vector<8x32xf32>
    %386 = arith.mulf %385, %341 : vector<8x32xf32>
    %387 = vector.extract_strided_slice %377 {offsets = [0, 0], sizes = [8, 32], strides = [1, 1]} : vector<8x96xf32> to vector<8x32xf32>
    %388 = arith.mulf %387, %379 : vector<8x32xf32>
    %389 = arith.addf %386, %388 : vector<8x32xf32>
    %390 = vector.extract_strided_slice %369 {offsets = [0, 64], sizes = [8, 32], strides = [1, 1]} : vector<8x96xf32> to vector<8x32xf32>
    %391 = math.tanh %384 : vector<8x32xf32>
    %392 = arith.mulf %390, %391 : vector<8x32xf32>
    %393 = vector.extract_strided_slice %377 {offsets = [0, 64], sizes = [8, 32], strides = [1, 1]} : vector<8x96xf32> to vector<8x32xf32>
    %394 = math.tanh %389 : vector<8x32xf32>
    %395 = arith.mulf %393, %394 : vector<8x32xf32>
    %c7_132 = arith.constant 7 : index
    %c0_133 = arith.constant 0 : index
    %c0_134 = arith.constant 0 : index
    %396 = vector.load %arg10[%c7_132, %c0_133, %c0_134] : memref<8x8x32xf32, #tpu.memory_space<vmem>>, vector<1x8x32xf32>
    %397 = vector.shape_cast %396 : vector<1x8x32xf32> to vector<8x32xf32>
    %398 = vector.shape_cast %392 : vector<8x32xf32> to vector<1x8x32xf32>
    tpu.vector_store %arg10[%c7_132, %c0_133, %c0_134], %398 {strides = array<i32>} : memref<8x8x32xf32, #tpu.memory_space<vmem>>, vector<1x8x32xf32>,
    %c0_135 = arith.constant 0 : index
    %c0_136 = arith.constant 0 : index
    %c0_137 = arith.constant 0 : index
    %399 = vector.load %arg11[%c0_135, %c0_136, %c0_137] : memref<8x8x32xf32, #tpu.memory_space<vmem>>, vector<1x8x32xf32>
    %400 = vector.shape_cast %399 : vector<1x8x32xf32> to vector<8x32xf32>
    %401 = vector.shape_cast %395 : vector<8x32xf32> to vector<1x8x32xf32>
    tpu.vector_store %arg11[%c0_135, %c0_136, %c0_137], %401 {strides = array<i32>} : memref<8x8x32xf32, #tpu.memory_space<vmem>>, vector<1x8x32xf32>,
    %c0_138 = arith.constant 0 : index
    %c0_139 = arith.constant 0 : index
    %c0_140 = arith.constant 0 : index
    %402 = vector.load %arg10[%c0_138, %c0_139, %c0_140] : memref<8x8x32xf32, #tpu.memory_space<vmem>>, vector<8x8x32xf32>
    %403 = vector.shape_cast %402 : vector<8x8x32xf32> to vector<64x32xf32>
    %c0_141 = arith.constant 0 : index
    %c0_142 = arith.constant 0 : index
    %c0_143 = arith.constant 0 : index
    %404 = vector.load %arg11[%c0_141, %c0_142, %c0_143] : memref<8x8x32xf32, #tpu.memory_space<vmem>>, vector<8x8x32xf32>
    %405 = vector.shape_cast %404 : vector<8x8x32xf32> to vector<64x32xf32>
    %406 = tpu.concatenate %403, %405 in 1 : vector<64x32xf32>, vector<64x32xf32> -> vector<64x64xf32>
    %407 = arith.truncf %406 : vector<64x64xf32> to vector<64x64xbf16>
    %c0_144 = arith.constant 0 : index
    %c0_145 = arith.constant 0 : index
    %408 = vector.load %arg5[%c0_144, %c0_145] : memref<64x128xbf16, #tpu.memory_space<vmem>>, vector<64x128xbf16>
    %cst_146 = arith.constant dense<0.000000e+00> : vector<64x128xf32>
    %409 = tpu.matmul %407, %408, %cst_146 {dimension_numbers = #tpu.dot_dimension_numbers<[1], [0], [0], [1], [0, 0, 1, 1], [], []>} : vector<64x64xbf16>, vector<64x128xbf16>, vector<64x128xf32> -> vector<64x128xf32>
    %c0_147 = arith.constant 0 : index
    %c0_148 = arith.constant 0 : index
    %410 = vector.load %arg6[%c0_147, %c0_148] : memref<1x128xf32, #tpu.memory_space<vmem>>, vector<1x128xf32>
    %411 = vector.broadcast %410 : vector<1x128xf32> to vector<64x128xf32>
    %412 = arith.addf %409, %411 : vector<64x128xf32>
    %413 = vector.shape_cast %412 : vector<64x128xf32> to vector<8x8x128xf32>
    %c0_149 = arith.constant 0 : index
    %c0_150 = arith.constant 0 : index
    %c0_151 = arith.constant 0 : index
    %414 = vector.load %arg7[%c0_149, %c0_150, %c0_151] : memref<8x8x128xf32, #tpu.memory_space<vmem>>, vector<8x8x128xf32>
    tpu.vector_store %arg7[%c0_149, %c0_150, %c0_151], %413 {strides = array<i32>} : memref<8x8x128xf32, #tpu.memory_space<vmem>>, vector<8x8x128xf32>,
    return
  }
}

</mosaic_0001>

<llo_original>
// kernel: tpu_custom_call.1
$region0: #{tpu_custom_call.1}
  #allocation0 [shape = 'u32[]', space=smem, size = 0x4, offset = 0x4, fixed_abs, tag = 'smem constant byte address 0x4 - core index']
  #allocation1 [shape = 'u32[72,128]{1,0:T(1,128)}', space=vmem, size = 0x9000, scoped, tag = 'internal scratch']
  #allocation2 [shape = 'bf16[8,8,128]{2,1,0:T(8,128)(2,1)}', space=vmem, size = 0x4000, scoped, tag = 'scratch operand']
  #allocation3 [shape = 'bf16[8,8,128]{2,1,0:T(8,128)(2,1)}', space=vmem, size = 0x4000, scoped, tag = 'scratch operand']
  #allocation4 [shape = 'f32[8,8,32]{2,1,0:T(8,128)}', space=vmem, size = 0x8000, scoped, tag = 'scratch operand']
  #allocation5 [shape = 'f32[8,8,32]{2,1,0:T(8,128)}', space=vmem, size = 0x8000, scoped, tag = 'scratch operand']
  %s0 = inlined_call_operand.hbm [shape: f32[8,8,16], index: 0, kind: input, shape index: {}]
  %s1 = inlined_call_operand.hbm [shape: bf16[16,256], index: 1, kind: input, shape index: {}]
  %s2 = inlined_call_operand.hbm [shape: f32[1,256], index: 2, kind: input, shape index: {}]
  %s3 = inlined_call_operand.hbm [shape: f32[32,128], index: 3, kind: input, shape index: {}]
  %s4 = inlined_call_operand.hbm [shape: f32[32,128], index: 4, kind: input, shape index: {}]
  %s5 = inlined_call_operand.hbm [shape: bf16[64,128], index: 5, kind: input, shape index: {}]
  %s6 = inlined_call_operand.vmem [shape: f32[1,128], index: 6, kind: input, shape index: {}]
  %s7 = inlined_call_operand.hbm [shape: f32[8,8,128], index: 7, kind: output, shape index: {}]
  %s8 = sld [smem:[#allocation0]]
  $region62: #{tpu_custom_call.1} parent=0
    _
  %s10 = ssub.s32 1, %s8
  %s11 = scalar_select 0, %s10, %s8
  $region1: #{tpu_custom_call.1} parent=0
    #allocation6 [shape = 'u8[32768]{0}', space=vmem, size = 0x8000, scoped, tag = 'input window, operand 0, single buffered']
    #allocation7 [shape = 's32[1]{0}', space=sflag, size = 0x4, scoped, tag = 'scoped memory for tpu_custom_call.1']
    #allocation8 [shape = 's32[1]{0}', space=sflag, size = 0x4, scoped, tag = 'scoped memory for tpu_custom_call.1']
    #allocation9 [shape = 'u8[8192]{0}', space=vmem, size = 0x2000, scoped, tag = 'input window, operand 1, single buffered']
    #allocation10 [shape = 's32[1]{0}', space=sflag, size = 0x4, scoped, tag = 'scoped memory for tpu_custom_call.1']
    #allocation11 [shape = 'u8[1024]{0}', space=vmem, size = 0x400, scoped, tag = 'input window, operand 2, single buffered']
    #allocation12 [shape = 'u8[16384]{0}', space=vmem, size = 0x4000, scoped, tag = 'input window, operand 3, single buffered']
    #allocation13 [shape = 's32[1]{0}', space=sflag, size = 0x4, scoped, tag = 'scoped memory for tpu_custom_call.1']
    #allocation14 [shape = 'u8[16384]{0}', space=vmem, size = 0x4000, scoped, tag = 'input window, operand 4, single buffered']
    #allocation15 [shape = 'u8[16384]{0}', space=vmem, size = 0x4000, scoped, tag = 'input window, operand 5, single buffered']
    #allocation16 [shape = 's32[1]{0}', space=sflag, size = 0x4, scoped, tag = 'scoped memory for tpu_custom_call.1']
    #allocation17 [shape = 'u8[32768]{0}', space=vmem, size = 0x8000, scoped, tag = 'output window, operand 0, single buffered']
    %12 = vsyncpa [#allocation7], 0
    %13 = vsyncpa [#allocation10], 0
    %14 = vsyncpa [#allocation13], 0
    %15 = vsyncpa [#allocation16], 0
    %16 = vsyncpa [#allocation8], 0
    // Predicated region
    $region2: #{tpu_custom_call.1} parent=1 // pred_check
      _
    $region3: #{tpu_custom_call.1} parent=1 // pred_check_branch
      %18 = sbr.rel (0) target = $region5
    $region4: #{tpu_custom_call.1} parent=1 // pred_region
      %20 = vsyncadd [#allocation7], 0
      %s21 = sshll.u32 %s0, 4
      %s22 = int_to_ptr.hbm [resolvable:$true] %s21
      %s23 = sshll.u32 [#allocation6], 4
      %s24 = int_to_ptr.vmem [resolvable:$true] %s23
      %29 = dma.hbm_to_vmem [thread:$0]  %s22, 1024, %s24, [#allocation7], 128, 128, 8
    $region5: #{tpu_custom_call.1} parent=1 // pred_fallthru
      _
    // Predicated region
    $region6: #{tpu_custom_call.1} parent=1 // pred_check
      _
    $region7: #{tpu_custom_call.1} parent=1 // pred_check_branch
      %31 = sbr.rel (0) target = $region9
    $region8: #{tpu_custom_call.1} parent=1 // pred_region
      %33 = vsyncadd [#allocation10], 0
      %s34 = sshll.u32 %s1, 4
      %s35 = int_to_ptr.hbm [resolvable:$true] %s34
      %s36 = sshll.u32 [#allocation9], 4
      %s37 = int_to_ptr.vmem [resolvable:$true] %s36
      %42 = dma.hbm_to_vmem [thread:$0]  %s35, 256, %s37, [#allocation10], 128, 128, 8
    $region9: #{tpu_custom_call.1} parent=1 // pred_fallthru
      _
    // Predicated region
    $region10: #{tpu_custom_call.1} parent=1 // pred_check
      _
    $region11: #{tpu_custom_call.1} parent=1 // pred_check_branch
      %44 = sbr.rel (0) target = $region13
    $region12: #{tpu_custom_call.1} parent=1 // pred_region
      %46 = vsyncadd [#allocation10], 0
      %s48 = sshll.u32 %s2, 4
      %s49 = int_to_ptr.hbm [resolvable:$true] %s48
      %s50 = sshll.u32 [#allocation11], 4
      %s51 = int_to_ptr.vmem [resolvable:$true] %s50
      %53 = dma.hbm_to_vmem [thread:$0]  %s49, 32, %s51, [#allocation10]
    $region13: #{tpu_custom_call.1} parent=1 // pred_fallthru
      _
    // Predicated region
    $region14: #{tpu_custom_call.1} parent=1 // pred_check
      _
    $region15: #{tpu_custom_call.1} parent=1 // pred_check_branch
      %55 = sbr.rel (0) target = $region17
    $region16: #{tpu_custom_call.1} parent=1 // pred_region
      %57 = vsyncadd [#allocation13], 0
      %s58 = sshll.u32 %s3, 4
      %s59 = int_to_ptr.hbm [resolvable:$true] %s58
      %s60 = sshll.u32 [#allocation12], 4
      %s61 = int_to_ptr.vmem [resolvable:$true] %s60
      %66 = dma.hbm_to_vmem [thread:$0]  %s59, 512, %s61, [#allocation13], 128, 128, 8
    $region17: #{tpu_custom_call.1} parent=1 // pred_fallthru
      _
    // Predicated region
    $region18: #{tpu_custom_call.1} parent=1 // pred_check
      _
    $region19: #{tpu_custom_call.1} parent=1 // pred_check_branch
      %68 = sbr.rel (0) target = $region21
    $region20: #{tpu_custom_call.1} parent=1 // pred_region
      %70 = vsyncadd [#allocation13], 0
      %s71 = sshll.u32 %s4, 4
      %s72 = int_to_ptr.hbm [resolvable:$true] %s71
      %s73 = sshll.u32 [#allocation14], 4
      %s74 = int_to_ptr.vmem [resolvable:$true] %s73
      %79 = dma.hbm_to_vmem [thread:$0]  %s72, 512, %s74, [#allocation13], 128, 128, 8
    $region21: #{tpu_custom_call.1} parent=1 // pred_fallthru
      _
    // Predicated region
    $region22: #{tpu_custom_call.1} parent=1 // pred_check
      _
    $region23: #{tpu_custom_call.1} parent=1 // pred_check_branch
      %81 = sbr.rel (0) target = $region25
    $region24: #{tpu_custom_call.1} parent=1 // pred_region
      %83 = vsyncadd [#allocation16], 0
      %s84 = sshll.u32 %s5, 4
      %s85 = int_to_ptr.hbm [resolvable:$true] %s84
      %s86 = sshll.u32 [#allocation15], 4
      %s87 = int_to_ptr.vmem [resolvable:$true] %s86
      %92 = dma.hbm_to_vmem [thread:$0]  %s85, 512, %s87, [#allocation16], 64, 64, 4
    $region25: #{tpu_custom_call.1} parent=1 // pred_fallthru
      _
    // Predicated region
    $region26: #{tpu_custom_call.1} parent=1 // pred_check
      _
    $region27: #{tpu_custom_call.1} parent=1 // pred_check_branch
      %94 = sbr.rel (0) target = $region29
    $region28: #{tpu_custom_call.1} parent=1 // pred_region
      _
    $region29: #{tpu_custom_call.1} parent=1 // pred_fallthru
      _
    // Predicated region
    $region30: #{tpu_custom_call.1} parent=1 // pred_check
      _
    $region31: #{tpu_custom_call.1} parent=1 // pred_check_branch
      %96 = sbr.rel (0) target = $region33
    $region32: #{tpu_custom_call.1} parent=1 // pred_region
      %98 = dma.done [#allocation7], 1024
    $region33: #{tpu_custom_call.1} parent=1 // pred_fallthru
      _
    // Predicated region
    $region34: #{tpu_custom_call.1} parent=1 // pred_check
      _
    $region35: #{tpu_custom_call.1} parent=1 // pred_check_branch
      %100 = sbr.rel (0) target = $region37
    $region36: #{tpu_custom_call.1} parent=1 // pred_region
      %102 = dma.done [#allocation10], 256
    $region37: #{tpu_custom_call.1} parent=1 // pred_fallthru
      _
    // Predicated region
    $region38: #{tpu_custom_call.1} parent=1 // pred_check
      _
    $region39: #{tpu_custom_call.1} parent=1 // pred_check_branch
      %104 = sbr.rel (0) target = $region41
    $region40: #{tpu_custom_call.1} parent=1 // pred_region
      %106 = dma.done [#allocation10], 32
    $region41: #{tpu_custom_call.1} parent=1 // pred_fallthru
      _
    // Predicated region
    $region42: #{tpu_custom_call.1} parent=1 // pred_check
      _
    $region43: #{tpu_custom_call.1} parent=1 // pred_check_branch
      %108 = sbr.rel (0) target = $region45
    $region44: #{tpu_custom_call.1} parent=1 // pred_region
      %110 = dma.done [#allocation13], 512
    $region45: #{tpu_custom_call.1} parent=1 // pred_fallthru
      _
    // Predicated region
    $region46: #{tpu_custom_call.1} parent=1 // pred_check
      _
    $region47: #{tpu_custom_call.1} parent=1 // pred_check_branch
      %112 = sbr.rel (0) target = $region49
    $region48: #{tpu_custom_call.1} parent=1 // pred_region
      %114 = dma.done [#allocation13], 512
    $region49: #{tpu_custom_call.1} parent=1 // pred_fallthru
      _
    // Predicated region
    $region50: #{tpu_custom_call.1} parent=1 // pred_check
      _
    $region51: #{tpu_custom_call.1} parent=1 // pred_check_branch
      %116 = sbr.rel (0) target = $region53
    $region52: #{tpu_custom_call.1} parent=1 // pred_region
      %118 = dma.done [#allocation16], 512
    $region53: #{tpu_custom_call.1} parent=1 // pred_fallthru
      _
    %v120 = vld [vmem:[#allocation6] sm:$0xff]
    %v121 = vld [vmem:[#allocation6 + $0x8] sm:$0xff]
    %v122 = vld [vmem:[#allocation6 + $0x10] sm:$0xff]
    %v123 = vld [vmem:[#allocation6 + $0x18] sm:$0xff]
    %v124 = vld [vmem:[#allocation6 + $0x20] sm:$0xff]
    %v125 = vld [vmem:[#allocation6 + $0x28] sm:$0xff]
    %v126 = vld [vmem:[#allocation6 + $0x30] sm:$0xff]
    %v127 = vld [vmem:[#allocation6 + $0x38] sm:$0xff]
    %v128 = vpack.c.bf16 %v121, %v120
    %v129 = vpack.c.bf16 %v123, %v122
    %v130 = vpack.c.bf16 %v125, %v124
    %v131 = vpack.c.bf16 %v127, %v126
    %v132 = vld [vmem:[#allocation9] sm:$0xff]
    %v133 = vld [vmem:[#allocation9 + $0x8] sm:$0xff]
    %v134 = vld [vmem:[#allocation11] sm:$0x3]
    %v136 = vperm.slane %v134, 0
    %v137 = vperm.slane %v134, 1
    %v142 = vunpack.c.l.b16 %v132
    %v143 = vunpack.c.h.b16 %v132
    %v144 = vunpack.c.l.b16 %v133
    %v145 = vunpack.c.h.b16 %v133
    %v146 = vpack.c.b16 %v144, %v142
    %v147 = vpack.c.b16 %v145, %v143
    %vm150 = vcmask 130048
    %v152 = vsel %vm150, %v128, 0
    %v155 = vsel %vm150, %v129, 0
    %v158 = vsel %vm150, %v130, 0
    %v161 = vsel %vm150, %v131, 0
    %163 = vmatpush.bf16.msra.mxu0 0
    %164 = vmatpush.bf16.msra.mxu0 0
    %165 = vmatpush.bf16.msra.mxu0 0
    %166 = vmatpush.bf16.msra.mxu0 0
    %167 = vmatpush.bf16.msra.mxu0 0
    %168 = vmatpush.bf16.msra.mxu0 0
    %169 = vmatpush.bf16.msra.mxu0 0
    %170 = vmatpush.bf16.msra.mxu0 %v146
    %171 = vmatmul.bf16.gmra.mxu0 %v152
    %v172 = vpop.f32.mrf.mxu0
    %v173 = vadd.f32 %v136, %v172
    %v174 = vpop.f32.mrf.mxu0
    %v175 = vadd.f32 %v136, %v174
    %176 = vmatmul.bf16.gmra.mxu0 %v155
    %v177 = vpop.f32.mrf.mxu0
    %v178 = vadd.f32 %v136, %v177
    %v179 = vpop.f32.mrf.mxu0
    %v180 = vadd.f32 %v136, %v179
    %181 = vmatmul.bf16.gmra.mxu0 %v158
    %v182 = vpop.f32.mrf.mxu0
    %v183 = vadd.f32 %v136, %v182
    %v184 = vpop.f32.mrf.mxu0
    %v185 = vadd.f32 %v136, %v184
    %186 = vmatmul.bf16.gmra.mxu0 %v161
    %v187 = vpop.f32.mrf.mxu0
    %v188 = vadd.f32 %v136, %v187
    %v189 = vpop.f32.mrf.mxu0
    %v190 = vadd.f32 %v136, %v189
    %191 = vdwg.mxu0
    %192 = vmatpush.bf16.msra.mxu0 0
    %193 = vmatpush.bf16.msra.mxu0 0
    %194 = vmatpush.bf16.msra.mxu0 0
    %195 = vmatpush.bf16.msra.mxu0 0
    %196 = vmatpush.bf16.msra.mxu0 0
    %197 = vmatpush.bf16.msra.mxu0 0
    %198 = vmatpush.bf16.msra.mxu0 0
    %199 = vmatpush.bf16.msra.mxu0 %v147
    %200 = vmatmul.bf16.gmra.mxu0 %v152
    %v201 = vpop.f32.mrf.mxu0
    %v202 = vadd.f32 %v137, %v201
    %v203 = vpop.f32.mrf.mxu0
    %v204 = vadd.f32 %v137, %v203
    %205 = vmatmul.bf16.gmra.mxu0 %v155
    %v206 = vpop.f32.mrf.mxu0
    %v207 = vadd.f32 %v137, %v206
    %v208 = vpop.f32.mrf.mxu0
    %v209 = vadd.f32 %v137, %v208
    %210 = vmatmul.bf16.gmra.mxu0 %v158
    %v211 = vpop.f32.mrf.mxu0
    %v212 = vadd.f32 %v137, %v211
    %v213 = vpop.f32.mrf.mxu0
    %v214 = vadd.f32 %v137, %v213
    %215 = vmatmul.bf16.gmra.mxu0 %v161
    %v216 = vpop.f32.mrf.mxu0
    %v217 = vadd.f32 %v137, %v216
    %v218 = vpop.f32.mrf.mxu0
    %v219 = vadd.f32 %v137, %v218
    %220 = vdwg.mxu0
    %v221 = vpack.c.bf16 %v173, %v173
    %v222 = vpack.c.bf16 %v175, %v175
    %v223 = vpack.c.bf16 %v178, %v178
    %v224 = vpack.c.bf16 %v180, %v180
    %v225 = vpack.c.bf16 %v183, %v183
    %v226 = vpack.c.bf16 %v185, %v185
    %v227 = vpack.c.bf16 %v188, %v188
    %v228 = vpack.c.bf16 %v190, %v190
    %229 = vst [vmem:[#allocation2] sm:$0xf] %v221
    %230 = vst [vmem:[#allocation2 + $0x4] sm:$0xf] %v222
    %231 = vst [vmem:[#allocation2 + $0x8] sm:$0xf] %v223
    %232 = vst [vmem:[#allocation2 + $0xc] sm:$0xf] %v224
    %233 = vst [vmem:[#allocation2 + $0x10] sm:$0xf] %v225
    %234 = vst [vmem:[#allocation2 + $0x14] sm:$0xf] %v226
    %235 = vst [vmem:[#allocation2 + $0x18] sm:$0xf] %v227
    %236 = vst [vmem:[#allocation2 + $0x1c] sm:$0xf] %v228
    %v237 = vpack.c.bf16 %v202, %v202
    %v238 = vpack.c.bf16 %v204, %v204
    %v239 = vpack.c.bf16 %v207, %v207
    %v240 = vpack.c.bf16 %v209, %v209
    %v241 = vpack.c.bf16 %v212, %v212
    %v242 = vpack.c.bf16 %v214, %v214
    %v243 = vpack.c.bf16 %v217, %v217
    %v244 = vpack.c.bf16 %v219, %v219
    %245 = vst [vmem:[#allocation3] sm:$0xf] %v237
    %246 = vst [vmem:[#allocation3 + $0x4] sm:$0xf] %v238
    %247 = vst [vmem:[#allocation3 + $0x8] sm:$0xf] %v239
    %248 = vst [vmem:[#allocation3 + $0xc] sm:$0xf] %v240
    %249 = vst [vmem:[#allocation3 + $0x10] sm:$0xf] %v241
    %250 = vst [vmem:[#allocation3 + $0x14] sm:$0xf] %v242
    %251 = vst [vmem:[#allocation3 + $0x18] sm:$0xf] %v243
    %252 = vst [vmem:[#allocation3 + $0x1c] sm:$0xf] %v244
    %v253 = vld [vmem:[#allocation12] sm:$0xff]
    %v254 = vld [vmem:[#allocation12 + $0x8] sm:$0xff]
    %v255 = vld [vmem:[#allocation12 + $0x10] sm:$0xff]
    %v256 = vld [vmem:[#allocation12 + $0x18] sm:$0xff]
    %v257 = vld [vmem:[#allocation14] sm:$0xff]
    %v258 = vld [vmem:[#allocation14 + $0x8] sm:$0xff]
    %v259 = vld [vmem:[#allocation14 + $0x10] sm:$0xff]
    %v260 = vld [vmem:[#allocation14 + $0x18] sm:$0xff]
    %v261 = vld [vmem:[#allocation2] sm:$0xf]
    %v262 = vunpack.c.l.bf16 %v261
    %vm263 = vcmask 261120
    %v265 = vsel %vm263, 0.0, 0
    %267 = vmatpush.msra.mxu0 0.0
    %268 = vmatpush.msra.mxu0 0.0
    %269 = vmatpush.msra.mxu0 0.0
    %270 = vmatpush.msra.mxu0 0.0
    %271 = vmatpush.msra.mxu0 0.0
    %272 = vmatpush.msra.mxu0 0.0
    %273 = vmatpush.msra.mxu0 0.0
    %274 = vmatpush.msra.mxu0 0.0
    %275 = vmatpush.msra.mxu0 0.0
    %276 = vmatpush.msra.mxu0 0.0
    %277 = vmatpush.msra.mxu0 0.0
    %278 = vmatpush.msra.mxu0 0.0
    %279 = vmatpush.msra.mxu0 %v256
    %280 = vmatpush.msra.mxu0 %v255
    %281 = vmatpush.msra.mxu0 %v254
    %282 = vmatpush.msra.mxu0 %v253
    %283 = vmatmul.f32.gmra.mxu0 %v265
    %v284 = vpop.f32.mrf.mxu0
    %v285 = vadd.f32 0.0, %v284
    %286 = vdwg.mxu0
    %v287 = vadd.f32 %v262, %v285
    %s288 = scalar_lea.vmem [#allocation3], 28
    %v289 = vld [vmem:[%s288] sm:$0xf]
    %v290 = vunpack.c.l.bf16 %v289
    %291 = vmatpush.msra.mxu0 0.0
    %292 = vmatpush.msra.mxu0 0.0
    %293 = vmatpush.msra.mxu0 0.0
    %294 = vmatpush.msra.mxu0 0.0
    %295 = vmatpush.msra.mxu0 0.0
    %296 = vmatpush.msra.mxu0 0.0
    %297 = vmatpush.msra.mxu0 0.0
    %298 = vmatpush.msra.mxu0 0.0
    %299 = vmatpush.msra.mxu0 0.0
    %300 = vmatpush.msra.mxu0 0.0
    %301 = vmatpush.msra.mxu0 0.0
    %302 = vmatpush.msra.mxu0 0.0
    %303 = vmatpush.msra.mxu0 %v260
    %304 = vmatpush.msra.mxu0 %v259
    %305 = vmatpush.msra.mxu0 %v258
    %306 = vmatpush.msra.mxu0 %v257
    %307 = vmatmul.f32.gmra.mxu0 %v265
    %v308 = vpop.f32.mrf.mxu0
    %v309 = vadd.f32 0.0, %v308
    %310 = vdwg.mxu0
    %v311 = vadd.f32 %v290, %v309
    %v312 = vxor.u32 %v287, 2147483648
    %v313 = vmul.f32 %v312, 1.442695
    %v314 = vpow.pop %v313
    %v315 = vadd.f32 %v314, 1.0
    %v316 = vrcp.pop %v315
    %v317 = vmul.f32 %v315, %v316
    %v318 = vsub.f32 1.0, %v317
    %v319 = vmul.f32 %v316, %v318
    %v320 = vadd.f32 %v316, %v319
    %vm321 = vweird.f32 %v315
    %vm322 = vweird.f32 %v316
    %vm323 = vmor %vm321, %vm322
    %v324 = vsel %vm323, %v316, %v320
    %v325 = vand.u32 2147483647, %v315
    %vm326 = vcmp.eq.f32.partialorder %v325, 8.507059e+37
    %v327 = vand.u32 %v315, 2147483648
    %v328 = vor.u32 1.1754944e-38, %v327
    %v329 = vsel %vm326, %v328, %v324
    %v330 = vmul.f32 1.0, %v329
    %v331 = vtanh.pop %v287
    %v332 = vxor.u32 %v311, 2147483648
    %v333 = vmul.f32 %v332, 1.442695
    %v334 = vpow.pop %v333
    %v335 = vadd.f32 %v334, 1.0
    %v336 = vrcp.pop %v335
    %v337 = vmul.f32 %v335, %v336
    %v338 = vsub.f32 1.0, %v337
    %v339 = vmul.f32 %v336, %v338
    %v340 = vadd.f32 %v336, %v339
    %vm341 = vweird.f32 %v335
    %vm342 = vweird.f32 %v336
    %vm343 = vmor %vm341, %vm342
    %v344 = vsel %vm343, %v336, %v340
    %v345 = vand.u32 2147483647, %v335
    %vm346 = vcmp.eq.f32.partialorder %v345, 8.507059e+37
    %v347 = vand.u32 %v335, 2147483648
    %v348 = vor.u32 1.1754944e-38, %v347
    %v349 = vsel %vm346, %v348, %v344
    %v350 = vmul.f32 1.0, %v349
    %v351 = vtanh.pop %v311
    %v352 = vmul.f32 %v330, 0.0
    %354 = vrot.lane.b32.xlu0 %v331, 32
    %v355 = vpop.permute.xlu0 %354
    %v357 = vmul.f32 %v330, %v355
    %359 = vrot.lane.b32.xlu0 %v357, 32
    %v360 = vpop.permute.xlu0 %359
    %v362 = vadd.f32 %v352, %v360
    %v363 = vmul.f32 %v350, 0.0
    %365 = vrot.lane.b32.xlu0 %v351, 32
    %v366 = vpop.permute.xlu0 %365
    %v368 = vmul.f32 %v350, %v366
    %370 = vrot.lane.b32.xlu0 %v368, 32
    %v371 = vpop.permute.xlu0 %370
    %v373 = vadd.f32 %v363, %v371
    %v374 = vtanh.pop %v362
    %376 = vrot.lane.b32.xlu0 %v374, 32
    %v377 = vpop.permute.xlu0 %376
    %v379 = vmul.f32 %v330, %v377
    %v380 = vtanh.pop %v373
    %382 = vrot.lane.b32.xlu0 %v380, 32
    %v383 = vpop.permute.xlu0 %382
    %v385 = vmul.f32 %v350, %v383
    %387 = vrot.lane.b32.xlu0 %v379, 64
    %v388 = vpop.permute.xlu0 %387
    %390 = vst.msk [vmem:[#allocation4] sm:$0xff] %vm263, %v388
    %392 = vrot.lane.b32.xlu0 %v385, 64
    %v393 = vpop.permute.xlu0 %392
    %s395 = scalar_lea.vmem [#allocation5], 56
    %396 = vst.msk [vmem:[%s395] sm:$0xff] %vm263, %v393
    %s397 = scalar_lea.vmem [#allocation2], 4
    %v398 = vld [vmem:[%s397] sm:$0xf]
    %v399 = vunpack.c.l.bf16 %v398
    %v400 = vsel %vm263, %v388, 0
    %402 = vmatpush.msra.mxu0 0.0
    %403 = vmatpush.msra.mxu0 0.0
    %404 = vmatpush.msra.mxu0 0.0
    %405 = vmatpush.msra.mxu0 0.0
    %406 = vmatpush.msra.mxu0 0.0
    %407 = vmatpush.msra.mxu0 0.0
    %408 = vmatpush.msra.mxu0 0.0
    %409 = vmatpush.msra.mxu0 0.0
    %410 = vmatpush.msra.mxu0 0.0
    %411 = vmatpush.msra.mxu0 0.0
    %412 = vmatpush.msra.mxu0 0.0
    %413 = vmatpush.msra.mxu0 0.0
    %414 = vmatpush.msra.mxu0 %v256
    %415 = vmatpush.msra.mxu0 %v255
    %416 = vmatpush.msra.mxu0 %v254
    %417 = vmatpush.msra.mxu0 %v253
    %418 = vmatmul.f32.gmra.mxu0 %v400
    %v419 = vpop.f32.mrf.mxu0
    %v420 = vadd.f32 0.0, %v419
    %421 = vdwg.mxu0
    %v422 = vadd.f32 %v399, %v420
    %s423 = scalar_lea.vmem [#allocation3], 24
    %v424 = vld [vmem:[%s423] sm:$0xf]
    %v425 = vunpack.c.l.bf16 %v424
    %v426 = vsel %vm263, %v393, 0
    %428 = vmatpush.msra.mxu0 0.0
    %429 = vmatpush.msra.mxu0 0.0
    %430 = vmatpush.msra.mxu0 0.0
    %431 = vmatpush.msra.mxu0 0.0
    %432 = vmatpush.msra.mxu0 0.0
    %433 = vmatpush.msra.mxu0 0.0
    %434 = vmatpush.msra.mxu0 0.0
    %435 = vmatpush.msra.mxu0 0.0
    %436 = vmatpush.msra.mxu0 0.0
    %437 = vmatpush.msra.mxu0 0.0
    %438 = vmatpush.msra.mxu0 0.0
    %439 = vmatpush.msra.mxu0 0.0
    %440 = vmatpush.msra.mxu0 %v260
    %441 = vmatpush.msra.mxu0 %v259
    %442 = vmatpush.msra.mxu0 %v258
    %443 = vmatpush.msra.mxu0 %v257
    %444 = vmatmul.f32.gmra.mxu0 %v426
    %v445 = vpop.f32.mrf.mxu0
    %v446 = vadd.f32 0.0, %v445
    %447 = vdwg.mxu0
    %v448 = vadd.f32 %v425, %v446
    %v449 = vxor.u32 %v422, 2147483648
    %v450 = vmul.f32 %v449, 1.442695
    %v451 = vpow.pop %v450
    %v452 = vadd.f32 %v451, 1.0
    %v453 = vrcp.pop %v452
    %v454 = vmul.f32 %v452, %v453
    %v455 = vsub.f32 1.0, %v454
    %v456 = vmul.f32 %v453, %v455
    %v457 = vadd.f32 %v453, %v456
    %vm458 = vweird.f32 %v452
    %vm459 = vweird.f32 %v453
    %vm460 = vmor %vm458, %vm459
    %v461 = vsel %vm460, %v453, %v457
    %v462 = vand.u32 2147483647, %v452
    %vm463 = vcmp.eq.f32.partialorder %v462, 8.507059e+37
    %v464 = vand.u32 %v452, 2147483648
    %v465 = vor.u32 1.1754944e-38, %v464
    %v466 = vsel %vm463, %v465, %v461
    %v467 = vmul.f32 1.0, %v466
    %v468 = vtanh.pop %v422
    %v469 = vxor.u32 %v448, 2147483648
    %v470 = vmul.f32 %v469, 1.442695
    %v471 = vpow.pop %v470
    %v472 = vadd.f32 %v471, 1.0
    %v473 = vrcp.pop %v472
    %v474 = vmul.f32 %v472, %v473
    %v475 = vsub.f32 1.0, %v474
    %v476 = vmul.f32 %v473, %v475
    %v477 = vadd.f32 %v473, %v476
    %vm478 = vweird.f32 %v472
    %vm479 = vweird.f32 %v473
    %vm480 = vmor %vm478, %vm479
    %v481 = vsel %vm480, %v473, %v477
    %v482 = vand.u32 2147483647, %v472
    %vm483 = vcmp.eq.f32.partialorder %v482, 8.507059e+37
    %v484 = vand.u32 %v472, 2147483648
    %v485 = vor.u32 1.1754944e-38, %v484
    %v486 = vsel %vm483, %v485, %v481
    %v487 = vmul.f32 1.0, %v486
    %v488 = vtanh.pop %v448
    %v489 = vmul.f32 %v467, %v362
    %491 = vrot.lane.b32.xlu0 %v468, 32
    %v492 = vpop.permute.xlu0 %491
    %v494 = vmul.f32 %v467, %v492
    %496 = vrot.lane.b32.xlu0 %v494, 32
    %v497 = vpop.permute.xlu0 %496
    %v499 = vadd.f32 %v489, %v497
    %v500 = vmul.f32 %v487, %v373
    %502 = vrot.lane.b32.xlu0 %v488, 32
    %v503 = vpop.permute.xlu0 %502
    %v505 = vmul.f32 %v487, %v503
    %507 = vrot.lane.b32.xlu0 %v505, 32
    %v508 = vpop.permute.xlu0 %507
    %v510 = vadd.f32 %v500, %v508
    %v511 = vtanh.pop %v499
    %513 = vrot.lane.b32.xlu0 %v511, 32
    %v514 = vpop.permute.xlu0 %513
    %v516 = vmul.f32 %v467, %v514
    %v517 = vtanh.pop %v510
    %519 = vrot.lane.b32.xlu0 %v517, 32
    %v520 = vpop.permute.xlu0 %519
    %v522 = vmul.f32 %v487, %v520
    %524 = vrot.lane.b32.xlu0 %v516, 64
    %v525 = vpop.permute.xlu0 %524
    %s527 = scalar_lea.vmem [#allocation4], 8
    %528 = vst.msk [vmem:[%s527] sm:$0xff] %vm263, %v525
    %530 = vrot.lane.b32.xlu0 %v522, 64
    %v531 = vpop.permute.xlu0 %530
    %s533 = scalar_lea.vmem [#allocation5], 48
    %534 = vst.msk [vmem:[%s533] sm:$0xff] %vm263, %v531
    %s535 = scalar_lea.vmem [#allocation2], 8
    %v536 = vld [vmem:[%s535] sm:$0xf]
    %v537 = vunpack.c.l.bf16 %v536
    %v538 = vsel %vm263, %v525, 0
    %540 = vmatpush.msra.mxu0 0.0
    %541 = vmatpush.msra.mxu0 0.0
    %542 = vmatpush.msra.mxu0 0.0
    %543 = vmatpush.msra.mxu0 0.0
    %544 = vmatpush.msra.mxu0 0.0
    %545 = vmatpush.msra.mxu0 0.0
    %546 = vmatpush.msra.mxu0 0.0
    %547 = vmatpush.msra.mxu0 0.0
    %548 = vmatpush.msra.mxu0 0.0
    %549 = vmatpush.msra.mxu0 0.0
    %550 = vmatpush.msra.mxu0 0.0
    %551 = vmatpush.msra.mxu0 0.0
    %552 = vmatpush.msra.mxu0 %v256
    %553 = vmatpush.msra.mxu0 %v255
    %554 = vmatpush.msra.mxu0 %v254
    %555 = vmatpush.msra.mxu0 %v253
    %556 = vmatmul.f32.gmra.mxu0 %v538
    %v557 = vpop.f32.mrf.mxu0
    %v558 = vadd.f32 0.0, %v557
    %559 = vdwg.mxu0
    %v560 = vadd.f32 %v537, %v558
    %s561 = scalar_lea.vmem [#allocation3], 20
    %v562 = vld [vmem:[%s561] sm:$0xf]
    %v563 = vunpack.c.l.bf16 %v562
    %v564 = vsel %vm263, %v531, 0
    %566 = vmatpush.msra.mxu0 0.0
    %567 = vmatpush.msra.mxu0 0.0
    %568 = vmatpush.msra.mxu0 0.0
    %569 = vmatpush.msra.mxu0 0.0
    %570 = vmatpush.msra.mxu0 0.0
    %571 = vmatpush.msra.mxu0 0.0
    %572 = vmatpush.msra.mxu0 0.0
    %573 = vmatpush.msra.mxu0 0.0
    %574 = vmatpush.msra.mxu0 0.0
    %575 = vmatpush.msra.mxu0 0.0
    %576 = vmatpush.msra.mxu0 0.0
    %577 = vmatpush.msra.mxu0 0.0
    %578 = vmatpush.msra.mxu0 %v260
    %579 = vmatpush.msra.mxu0 %v259
    %580 = vmatpush.msra.mxu0 %v258
    %581 = vmatpush.msra.mxu0 %v257
    %582 = vmatmul.f32.gmra.mxu0 %v564
    %v583 = vpop.f32.mrf.mxu0
    %v584 = vadd.f32 0.0, %v583
    %585 = vdwg.mxu0
    %v586 = vadd.f32 %v563, %v584
    %v587 = vxor.u32 %v560, 2147483648
    %v588 = vmul.f32 %v587, 1.442695
    %v589 = vpow.pop %v588
    %v590 = vadd.f32 %v589, 1.0
    %v591 = vrcp.pop %v590
    %v592 = vmul.f32 %v590, %v591
    %v593 = vsub.f32 1.0, %v592
    %v594 = vmul.f32 %v591, %v593
    %v595 = vadd.f32 %v591, %v594
    %vm596 = vweird.f32 %v590
    %vm597 = vweird.f32 %v591
    %vm598 = vmor %vm596, %vm597
    %v599 = vsel %vm598, %v591, %v595
    %v600 = vand.u32 2147483647, %v590
    %vm601 = vcmp.eq.f32.partialorder %v600, 8.507059e+37
    %v602 = vand.u32 %v590, 2147483648
    %v603 = vor.u32 1.1754944e-38, %v602
    %v604 = vsel %vm601, %v603, %v599
    %v605 = vmul.f32 1.0, %v604
    %v606 = vtanh.pop %v560
    %v607 = vxor.u32 %v586, 2147483648
    %v608 = vmul.f32 %v607, 1.442695
    %v609 = vpow.pop %v608
    %v610 = vadd.f32 %v609, 1.0
    %v611 = vrcp.pop %v610
    %v612 = vmul.f32 %v610, %v611
    %v613 = vsub.f32 1.0, %v612
    %v614 = vmul.f32 %v611, %v613
    %v615 = vadd.f32 %v611, %v614
    %vm616 = vweird.f32 %v610
    %vm617 = vweird.f32 %v611
    %vm618 = vmor %vm616, %vm617
    %v619 = vsel %vm618, %v611, %v615
    %v620 = vand.u32 2147483647, %v610
    %vm621 = vcmp.eq.f32.partialorder %v620, 8.507059e+37
    %v622 = vand.u32 %v610, 2147483648
    %v623 = vor.u32 1.1754944e-38, %v622
    %v624 = vsel %vm621, %v623, %v619
    %v625 = vmul.f32 1.0, %v624
    %v626 = vtanh.pop %v586
    %v627 = vmul.f32 %v605, %v499
    %629 = vrot.lane.b32.xlu0 %v606, 32
    %v630 = vpop.permute.xlu0 %629
    %v632 = vmul.f32 %v605, %v630
    %634 = vrot.lane.b32.xlu0 %v632, 32
    %v635 = vpop.permute.xlu0 %634
    %v637 = vadd.f32 %v627, %v635
    %v638 = vmul.f32 %v625, %v510
    %640 = vrot.lane.b32.xlu0 %v626, 32
    %v641 = vpop.permute.xlu0 %640
    %v643 = vmul.f32 %v625, %v641
    %645 = vrot.lane.b32.xlu0 %v643, 32
    %v646 = vpop.permute.xlu0 %645
    %v648 = vadd.f32 %v638, %v646
    %v649 = vtanh.pop %v637
    %651 = vrot.lane.b32.xlu0 %v649, 32
    %v652 = vpop.permute.xlu0 %651
    %v654 = vmul.f32 %v605, %v652
    %v655 = vtanh.pop %v648
    %657 = vrot.lane.b32.xlu0 %v655, 32
    %v658 = vpop.permute.xlu0 %657
    %v660 = vmul.f32 %v625, %v658
    %662 = vrot.lane.b32.xlu0 %v654, 64
    %v663 = vpop.permute.xlu0 %662
    %s665 = scalar_lea.vmem [#allocation4], 16
    %666 = vst.msk [vmem:[%s665] sm:$0xff] %vm263, %v663
    %668 = vrot.lane.b32.xlu0 %v660, 64
    %v669 = vpop.permute.xlu0 %668
    %s671 = scalar_lea.vmem [#allocation5], 40
    %672 = vst.msk [vmem:[%s671] sm:$0xff] %vm263, %v669
    %s673 = scalar_lea.vmem [#allocation2], 12
    %v674 = vld [vmem:[%s673] sm:$0xf]
    %v675 = vunpack.c.l.bf16 %v674
    %v676 = vsel %vm263, %v663, 0
    %678 = vmatpush.msra.mxu0 0.0
    %679 = vmatpush.msra.mxu0 0.0
    %680 = vmatpush.msra.mxu0 0.0
    %681 = vmatpush.msra.mxu0 0.0
    %682 = vmatpush.msra.mxu0 0.0
    %683 = vmatpush.msra.mxu0 0.0
    %684 = vmatpush.msra.mxu0 0.0
    %685 = vmatpush.msra.mxu0 0.0
    %686 = vmatpush.msra.mxu0 0.0
    %687 = vmatpush.msra.mxu0 0.0
    %688 = vmatpush.msra.mxu0 0.0
    %689 = vmatpush.msra.mxu0 0.0
    %690 = vmatpush.msra.mxu0 %v256
    %691 = vmatpush.msra.mxu0 %v255
    %692 = vmatpush.msra.mxu0 %v254
    %693 = vmatpush.msra.mxu0 %v253
    %694 = vmatmul.f32.gmra.mxu0 %v676
    %v695 = vpop.f32.mrf.mxu0
    %v696 = vadd.f32 0.0, %v695
    %697 = vdwg.mxu0
    %v698 = vadd.f32 %v675, %v696
    %s699 = scalar_lea.vmem [#allocation3], 16
    %v700 = vld [vmem:[%s699] sm:$0xf]
    %v701 = vunpack.c.l.bf16 %v700
    %v702 = vsel %vm263, %v669, 0
    %704 = vmatpush.msra.mxu0 0.0
    %705 = vmatpush.msra.mxu0 0.0
    %706 = vmatpush.msra.mxu0 0.0
    %707 = vmatpush.msra.mxu0 0.0
    %708 = vmatpush.msra.mxu0 0.0
    %709 = vmatpush.msra.mxu0 0.0
    %710 = vmatpush.msra.mxu0 0.0
    %711 = vmatpush.msra.mxu0 0.0
    %712 = vmatpush.msra.mxu0 0.0
    %713 = vmatpush.msra.mxu0 0.0
    %714 = vmatpush.msra.mxu0 0.0
    %715 = vmatpush.msra.mxu0 0.0
    %716 = vmatpush.msra.mxu0 %v260
    %717 = vmatpush.msra.mxu0 %v259
    %718 = vmatpush.msra.mxu0 %v258
    %719 = vmatpush.msra.mxu0 %v257
    %720 = vmatmul.f32.gmra.mxu0 %v702
    %v721 = vpop.f32.mrf.mxu0
    %v722 = vadd.f32 0.0, %v721
    %723 = vdwg.mxu0
    %v724 = vadd.f32 %v701, %v722
    %v725 = vxor.u32 %v698, 2147483648
    %v726 = vmul.f32 %v725, 1.442695
    %v727 = vpow.pop %v726
    %v728 = vadd.f32 %v727, 1.0
    %v729 = vrcp.pop %v728
    %v730 = vmul.f32 %v728, %v729
    %v731 = vsub.f32 1.0, %v730
    %v732 = vmul.f32 %v729, %v731
    %v733 = vadd.f32 %v729, %v732
    %vm734 = vweird.f32 %v728
    %vm735 = vweird.f32 %v729
    %vm736 = vmor %vm734, %vm735
    %v737 = vsel %vm736, %v729, %v733
    %v738 = vand.u32 2147483647, %v728
    %vm739 = vcmp.eq.f32.partialorder %v738, 8.507059e+37
    %v740 = vand.u32 %v728, 2147483648
    %v741 = vor.u32 1.1754944e-38, %v740
    %v742 = vsel %vm739, %v741, %v737
    %v743 = vmul.f32 1.0, %v742
    %v744 = vtanh.pop %v698
    %v745 = vxor.u32 %v724, 2147483648
    %v746 = vmul.f32 %v745, 1.442695
    %v747 = vpow.pop %v746
    %v748 = vadd.f32 %v747, 1.0
    %v749 = vrcp.pop %v748
    %v750 = vmul.f32 %v748, %v749
    %v751 = vsub.f32 1.0, %v750
    %v752 = vmul.f32 %v749, %v751
    %v753 = vadd.f32 %v749, %v752
    %vm754 = vweird.f32 %v748
    %vm755 = vweird.f32 %v749
    %vm756 = vmor %vm754, %vm755
    %v757 = vsel %vm756, %v749, %v753
    %v758 = vand.u32 2147483647, %v748
    %vm759 = vcmp.eq.f32.partialorder %v758, 8.507059e+37
    %v760 = vand.u32 %v748, 2147483648
    %v761 = vor.u32 1.1754944e-38, %v760
    %v762 = vsel %vm759, %v761, %v757
    %v763 = vmul.f32 1.0, %v762
    %v764 = vtanh.pop %v724
    %v765 = vmul.f32 %v743, %v637
    %767 = vrot.lane.b32.xlu0 %v744, 32
    %v768 = vpop.permute.xlu0 %767
    %v770 = vmul.f32 %v743, %v768
    %772 = vrot.lane.b32.xlu0 %v770, 32
    %v773 = vpop.permute.xlu0 %772
    %v775 = vadd.f32 %v765, %v773
    %v776 = vmul.f32 %v763, %v648
    %778 = vrot.lane.b32.xlu0 %v764, 32
    %v779 = vpop.permute.xlu0 %778
    %v781 = vmul.f32 %v763, %v779
    %783 = vrot.lane.b32.xlu0 %v781, 32
    %v784 = vpop.permute.xlu0 %783
    %v786 = vadd.f32 %v776, %v784
    %v787 = vtanh.pop %v775
    %789 = vrot.lane.b32.xlu0 %v787, 32
    %v790 = vpop.permute.xlu0 %789
    %v792 = vmul.f32 %v743, %v790
    %v793 = vtanh.pop %v786
    %795 = vrot.lane.b32.xlu0 %v793, 32
    %v796 = vpop.permute.xlu0 %795
    %v798 = vmul.f32 %v763, %v796
    %800 = vrot.lane.b32.xlu0 %v792, 64
    %v801 = vpop.permute.xlu0 %800
    %s803 = scalar_lea.vmem [#allocation4], 24
    %804 = vst.msk [vmem:[%s803] sm:$0xff] %vm263, %v801
    %806 = vrot.lane.b32.xlu0 %v798, 64
    %v807 = vpop.permute.xlu0 %806
    %s809 = scalar_lea.vmem [#allocation5], 32
    %810 = vst.msk [vmem:[%s809] sm:$0xff] %vm263, %v807
    %s811 = scalar_lea.vmem [#allocation2], 16
    %v812 = vld [vmem:[%s811] sm:$0xf]
    %v813 = vunpack.c.l.bf16 %v812
    %v814 = vsel %vm263, %v801, 0
    %816 = vmatpush.msra.mxu0 0.0
    %817 = vmatpush.msra.mxu0 0.0
    %818 = vmatpush.msra.mxu0 0.0
    %819 = vmatpush.msra.mxu0 0.0
    %820 = vmatpush.msra.mxu0 0.0
    %821 = vmatpush.msra.mxu0 0.0
    %822 = vmatpush.msra.mxu0 0.0
    %823 = vmatpush.msra.mxu0 0.0
    %824 = vmatpush.msra.mxu0 0.0
    %825 = vmatpush.msra.mxu0 0.0
    %826 = vmatpush.msra.mxu0 0.0
    %827 = vmatpush.msra.mxu0 0.0
    %828 = vmatpush.msra.mxu0 %v256
    %829 = vmatpush.msra.mxu0 %v255
    %830 = vmatpush.msra.mxu0 %v254
    %831 = vmatpush.msra.mxu0 %v253
    %832 = vmatmul.f32.gmra.mxu0 %v814
    %v833 = vpop.f32.mrf.mxu0
    %v834 = vadd.f32 0.0, %v833
    %835 = vdwg.mxu0
    %v836 = vadd.f32 %v813, %v834
    %s837 = scalar_lea.vmem [#allocation3], 12
    %v838 = vld [vmem:[%s837] sm:$0xf]
    %v839 = vunpack.c.l.bf16 %v838
    %v840 = vsel %vm263, %v807, 0
    %842 = vmatpush.msra.mxu0 0.0
    %843 = vmatpush.msra.mxu0 0.0
    %844 = vmatpush.msra.mxu0 0.0
    %845 = vmatpush.msra.mxu0 0.0
    %846 = vmatpush.msra.mxu0 0.0
    %847 = vmatpush.msra.mxu0 0.0
    %848 = vmatpush.msra.mxu0 0.0
    %849 = vmatpush.msra.mxu0 0.0
    %850 = vmatpush.msra.mxu0 0.0
    %851 = vmatpush.msra.mxu0 0.0
    %852 = vmatpush.msra.mxu0 0.0
    %853 = vmatpush.msra.mxu0 0.0
    %854 = vmatpush.msra.mxu0 %v260
    %855 = vmatpush.msra.mxu0 %v259
    %856 = vmatpush.msra.mxu0 %v258
    %857 = vmatpush.msra.mxu0 %v257
    %858 = vmatmul.f32.gmra.mxu0 %v840
    %v859 = vpop.f32.mrf.mxu0
    %v860 = vadd.f32 0.0, %v859
    %861 = vdwg.mxu0
    %v862 = vadd.f32 %v839, %v860
    %v863 = vxor.u32 %v836, 2147483648
    %v864 = vmul.f32 %v863, 1.442695
    %v865 = vpow.pop %v864
    %v866 = vadd.f32 %v865, 1.0
    %v867 = vrcp.pop %v866
    %v868 = vmul.f32 %v866, %v867
    %v869 = vsub.f32 1.0, %v868
    %v870 = vmul.f32 %v867, %v869
    %v871 = vadd.f32 %v867, %v870
    %vm872 = vweird.f32 %v866
    %vm873 = vweird.f32 %v867
    %vm874 = vmor %vm872, %vm873
    %v875 = vsel %vm874, %v867, %v871
    %v876 = vand.u32 2147483647, %v866
    %vm877 = vcmp.eq.f32.partialorder %v876, 8.507059e+37
    %v878 = vand.u32 %v866, 2147483648
    %v879 = vor.u32 1.1754944e-38, %v878
    %v880 = vsel %vm877, %v879, %v875
    %v881 = vmul.f32 1.0, %v880
    %v882 = vtanh.pop %v836
    %v883 = vxor.u32 %v862, 2147483648
    %v884 = vmul.f32 %v883, 1.442695
    %v885 = vpow.pop %v884
    %v886 = vadd.f32 %v885, 1.0
    %v887 = vrcp.pop %v886
    %v888 = vmul.f32 %v886, %v887
    %v889 = vsub.f32 1.0, %v888
    %v890 = vmul.f32 %v887, %v889
    %v891 = vadd.f32 %v887, %v890
    %vm892 = vweird.f32 %v886
    %vm893 = vweird.f32 %v887
    %vm894 = vmor %vm892, %vm893
    %v895 = vsel %vm894, %v887, %v891
    %v896 = vand.u32 2147483647, %v886
    %vm897 = vcmp.eq.f32.partialorder %v896, 8.507059e+37
    %v898 = vand.u32 %v886, 2147483648
    %v899 = vor.u32 1.1754944e-38, %v898
    %v900 = vsel %vm897, %v899, %v895
    %v901 = vmul.f32 1.0, %v900
    %v902 = vtanh.pop %v862
    %v903 = vmul.f32 %v881, %v775
    %905 = vrot.lane.b32.xlu0 %v882, 32
    %v906 = vpop.permute.xlu0 %905
    %v908 = vmul.f32 %v881, %v906
    %910 = vrot.lane.b32.xlu0 %v908, 32
    %v911 = vpop.permute.xlu0 %910
    %v913 = vadd.f32 %v903, %v911
    %v914 = vmul.f32 %v901, %v786
    %916 = vrot.lane.b32.xlu0 %v902, 32
    %v917 = vpop.permute.xlu0 %916
    %v919 = vmul.f32 %v901, %v917
    %921 = vrot.lane.b32.xlu0 %v919, 32
    %v922 = vpop.permute.xlu0 %921
    %v924 = vadd.f32 %v914, %v922
    %v925 = vtanh.pop %v913
    %927 = vrot.lane.b32.xlu0 %v925, 32
    %v928 = vpop.permute.xlu0 %927
    %v930 = vmul.f32 %v881, %v928
    %v931 = vtanh.pop %v924
    %933 = vrot.lane.b32.xlu0 %v931, 32
    %v934 = vpop.permute.xlu0 %933
    %v936 = vmul.f32 %v901, %v934
    %938 = vrot.lane.b32.xlu0 %v930, 64
    %v939 = vpop.permute.xlu0 %938
    %s941 = scalar_lea.vmem [#allocation4], 32
    %942 = vst.msk [vmem:[%s941] sm:$0xff] %vm263, %v939
    %944 = vrot.lane.b32.xlu0 %v936, 64
    %v945 = vpop.permute.xlu0 %944
    %s947 = scalar_lea.vmem [#allocation5], 24
    %948 = vst.msk [vmem:[%s947] sm:$0xff] %vm263, %v945
    %s949 = scalar_lea.vmem [#allocation2], 20
    %v950 = vld [vmem:[%s949] sm:$0xf]
    %v951 = vunpack.c.l.bf16 %v950
    %v952 = vsel %vm263, %v939, 0
    %954 = vmatpush.msra.mxu0 0.0
    %955 = vmatpush.msra.mxu0 0.0
    %956 = vmatpush.msra.mxu0 0.0
    %957 = vmatpush.msra.mxu0 0.0
    %958 = vmatpush.msra.mxu0 0.0
    %959 = vmatpush.msra.mxu0 0.0
    %960 = vmatpush.msra.mxu0 0.0
    %961 = vmatpush.msra.mxu0 0.0
    %962 = vmatpush.msra.mxu0 0.0
    %963 = vmatpush.msra.mxu0 0.0
    %964 = vmatpush.msra.mxu0 0.0
    %965 = vmatpush.msra.mxu0 0.0
    %966 = vmatpush.msra.mxu0 %v256
    %967 = vmatpush.msra.mxu0 %v255
    %968 = vmatpush.msra.mxu0 %v254
    %969 = vmatpush.msra.mxu0 %v253
    %970 = vmatmul.f32.gmra.mxu0 %v952
    %v971 = vpop.f32.mrf.mxu0
    %v972 = vadd.f32 0.0, %v971
    %973 = vdwg.mxu0
    %v974 = vadd.f32 %v951, %v972
    %s975 = scalar_lea.vmem [#allocation3], 8
    %v976 = vld [vmem:[%s975] sm:$0xf]
    %v977 = vunpack.c.l.bf16 %v976
    %v978 = vsel %vm263, %v945, 0
    %980 = vmatpush.msra.mxu0 0.0
    %981 = vmatpush.msra.mxu0 0.0
    %982 = vmatpush.msra.mxu0 0.0
    %983 = vmatpush.msra.mxu0 0.0
    %984 = vmatpush.msra.mxu0 0.0
    %985 = vmatpush.msra.mxu0 0.0
    %986 = vmatpush.msra.mxu0 0.0
    %987 = vmatpush.msra.mxu0 0.0
    %988 = vmatpush.msra.mxu0 0.0
    %989 = vmatpush.msra.mxu0 0.0
    %990 = vmatpush.msra.mxu0 0.0
    %991 = vmatpush.msra.mxu0 0.0
    %992 = vmatpush.msra.mxu0 %v260
    %993 = vmatpush.msra.mxu0 %v259
    %994 = vmatpush.msra.mxu0 %v258
    %995 = vmatpush.msra.mxu0 %v257
    %996 = vmatmul.f32.gmra.mxu0 %v978
    %v997 = vpop.f32.mrf.mxu0
    %v998 = vadd.f32 0.0, %v997
    %999 = vdwg.mxu0
    %v1000 = vadd.f32 %v977, %v998
    %v1001 = vxor.u32 %v974, 2147483648
    %v1002 = vmul.f32 %v1001, 1.442695
    %v1003 = vpow.pop %v1002
    %v1004 = vadd.f32 %v1003, 1.0
    %v1005 = vrcp.pop %v1004
    %v1006 = vmul.f32 %v1004, %v1005
    %v1007 = vsub.f32 1.0, %v1006
    %v1008 = vmul.f32 %v1005, %v1007
    %v1009 = vadd.f32 %v1005, %v1008
    %vm1010 = vweird.f32 %v1004
    %vm1011 = vweird.f32 %v1005
    %vm1012 = vmor %vm1010, %vm1011
    %v1013 = vsel %vm1012, %v1005, %v1009
    %v1014 = vand.u32 2147483647, %v1004
    %vm1015 = vcmp.eq.f32.partialorder %v1014, 8.507059e+37
    %v1016 = vand.u32 %v1004, 2147483648
    %v1017 = vor.u32 1.1754944e-38, %v1016
    %v1018 = vsel %vm1015, %v1017, %v1013
    %v1019 = vmul.f32 1.0, %v1018
    %v1020 = vtanh.pop %v974
    %v1021 = vxor.u32 %v1000, 2147483648
    %v1022 = vmul.f32 %v1021, 1.442695
    %v1023 = vpow.pop %v1022
    %v1024 = vadd.f32 %v1023, 1.0
    %v1025 = vrcp.pop %v1024
    %v1026 = vmul.f32 %v1024, %v1025
    %v1027 = vsub.f32 1.0, %v1026
    %v1028 = vmul.f32 %v1025, %v1027
    %v1029 = vadd.f32 %v1025, %v1028
    %vm1030 = vweird.f32 %v1024
    %vm1031 = vweird.f32 %v1025
    %vm1032 = vmor %vm1030, %vm1031
    %v1033 = vsel %vm1032, %v1025, %v1029
    %v1034 = vand.u32 2147483647, %v1024
    %vm1035 = vcmp.eq.f32.partialorder %v1034, 8.507059e+37
    %v1036 = vand.u32 %v1024, 2147483648
    %v1037 = vor.u32 1.1754944e-38, %v1036
    %v1038 = vsel %vm1035, %v1037, %v1033
    %v1039 = vmul.f32 1.0, %v1038
    %v1040 = vtanh.pop %v1000
    %v1041 = vmul.f32 %v1019, %v913
    %1043 = vrot.lane.b32.xlu0 %v1020, 32
    %v1044 = vpop.permute.xlu0 %1043
    %v1046 = vmul.f32 %v1019, %v1044
    %1048 = vrot.lane.b32.xlu0 %v1046, 32
    %v1049 = vpop.permute.xlu0 %1048
    %v1051 = vadd.f32 %v1041, %v1049
    %v1052 = vmul.f32 %v1039, %v924
    %1054 = vrot.lane.b32.xlu0 %v1040, 32
    %v1055 = vpop.permute.xlu0 %1054
    %v1057 = vmul.f32 %v1039, %v1055
    %1059 = vrot.lane.b32.xlu0 %v1057, 32
    %v1060 = vpop.permute.xlu0 %1059
    %v1062 = vadd.f32 %v1052, %v1060
    %v1063 = vtanh.pop %v1051
    %1065 = vrot.lane.b32.xlu0 %v1063, 32
    %v1066 = vpop.permute.xlu0 %1065
    %v1068 = vmul.f32 %v1019, %v1066
    %v1069 = vtanh.pop %v1062
    %1071 = vrot.lane.b32.xlu0 %v1069, 32
    %v1072 = vpop.permute.xlu0 %1071
    %v1074 = vmul.f32 %v1039, %v1072
    %1076 = vrot.lane.b32.xlu0 %v1068, 64
    %v1077 = vpop.permute.xlu0 %1076
    %s1079 = scalar_lea.vmem [#allocation4], 40
    %1080 = vst.msk [vmem:[%s1079] sm:$0xff] %vm263, %v1077
    %1082 = vrot.lane.b32.xlu0 %v1074, 64
    %v1083 = vpop.permute.xlu0 %1082
    %s1085 = scalar_lea.vmem [#allocation5], 16
    %1086 = vst.msk [vmem:[%s1085] sm:$0xff] %vm263, %v1083
    %s1087 = scalar_lea.vmem [#allocation2], 24
    %v1088 = vld [vmem:[%s1087] sm:$0xf]
    %v1089 = vunpack.c.l.bf16 %v1088
    %v1090 = vsel %vm263, %v1077, 0
    %1092 = vmatpush.msra.mxu0 0.0
    %1093 = vmatpush.msra.mxu0 0.0
    %1094 = vmatpush.msra.mxu0 0.0
    %1095 = vmatpush.msra.mxu0 0.0
    %1096 = vmatpush.msra.mxu0 0.0
    %1097 = vmatpush.msra.mxu0 0.0
    %1098 = vmatpush.msra.mxu0 0.0
    %1099 = vmatpush.msra.mxu0 0.0
    %1100 = vmatpush.msra.mxu0 0.0
    %1101 = vmatpush.msra.mxu0 0.0
    %1102 = vmatpush.msra.mxu0 0.0
    %1103 = vmatpush.msra.mxu0 0.0
    %1104 = vmatpush.msra.mxu0 %v256
    %1105 = vmatpush.msra.mxu0 %v255
    %1106 = vmatpush.msra.mxu0 %v254
    %1107 = vmatpush.msra.mxu0 %v253
    %1108 = vmatmul.f32.gmra.mxu0 %v1090
    %v1109 = vpop.f32.mrf.mxu0
    %v1110 = vadd.f32 0.0, %v1109
    %1111 = vdwg.mxu0
    %v1112 = vadd.f32 %v1089, %v1110
    %s1113 = scalar_lea.vmem [#allocation3], 4
    %v1114 = vld [vmem:[%s1113] sm:$0xf]
    %v1115 = vunpack.c.l.bf16 %v1114
    %v1116 = vsel %vm263, %v1083, 0
    %1118 = vmatpush.msra.mxu0 0.0
    %1119 = vmatpush.msra.mxu0 0.0
    %1120 = vmatpush.msra.mxu0 0.0
    %1121 = vmatpush.msra.mxu0 0.0
    %1122 = vmatpush.msra.mxu0 0.0
    %1123 = vmatpush.msra.mxu0 0.0
    %1124 = vmatpush.msra.mxu0 0.0
    %1125 = vmatpush.msra.mxu0 0.0
    %1126 = vmatpush.msra.mxu0 0.0
    %1127 = vmatpush.msra.mxu0 0.0
    %1128 = vmatpush.msra.mxu0 0.0
    %1129 = vmatpush.msra.mxu0 0.0
    %1130 = vmatpush.msra.mxu0 %v260
    %1131 = vmatpush.msra.mxu0 %v259
    %1132 = vmatpush.msra.mxu0 %v258
    %1133 = vmatpush.msra.mxu0 %v257
    %1134 = vmatmul.f32.gmra.mxu0 %v1116
    %v1135 = vpop.f32.mrf.mxu0
    %v1136 = vadd.f32 0.0, %v1135
    %1137 = vdwg.mxu0
    %v1138 = vadd.f32 %v1115, %v1136
    %v1139 = vxor.u32 %v1112, 2147483648
    %v1140 = vmul.f32 %v1139, 1.442695
    %v1141 = vpow.pop %v1140
    %v1142 = vadd.f32 %v1141, 1.0
    %v1143 = vrcp.pop %v1142
    %v1144 = vmul.f32 %v1142, %v1143
    %v1145 = vsub.f32 1.0, %v1144
    %v1146 = vmul.f32 %v1143, %v1145
    %v1147 = vadd.f32 %v1143, %v1146
    %vm1148 = vweird.f32 %v1142
    %vm1149 = vweird.f32 %v1143
    %vm1150 = vmor %vm1148, %vm1149
    %v1151 = vsel %vm1150, %v1143, %v1147
    %v1152 = vand.u32 2147483647, %v1142
    %vm1153 = vcmp.eq.f32.partialorder %v1152, 8.507059e+37
    %v1154 = vand.u32 %v1142, 2147483648
    %v1155 = vor.u32 1.1754944e-38, %v1154
    %v1156 = vsel %vm1153, %v1155, %v1151
    %v1157 = vmul.f32 1.0, %v1156
    %v1158 = vtanh.pop %v1112
    %v1159 = vxor.u32 %v1138, 2147483648
    %v1160 = vmul.f32 %v1159, 1.442695
    %v1161 = vpow.pop %v1160
    %v1162 = vadd.f32 %v1161, 1.0
    %v1163 = vrcp.pop %v1162
    %v1164 = vmul.f32 %v1162, %v1163
    %v1165 = vsub.f32 1.0, %v1164
    %v1166 = vmul.f32 %v1163, %v1165
    %v1167 = vadd.f32 %v1163, %v1166
    %vm1168 = vweird.f32 %v1162
    %vm1169 = vweird.f32 %v1163
    %vm1170 = vmor %vm1168, %vm1169
    %v1171 = vsel %vm1170, %v1163, %v1167
    %v1172 = vand.u32 2147483647, %v1162
    %vm1173 = vcmp.eq.f32.partialorder %v1172, 8.507059e+37
    %v1174 = vand.u32 %v1162, 2147483648
    %v1175 = vor.u32 1.1754944e-38, %v1174
    %v1176 = vsel %vm1173, %v1175, %v1171
    %v1177 = vmul.f32 1.0, %v1176
    %v1178 = vtanh.pop %v1138
    %v1179 = vmul.f32 %v1157, %v1051
    %1181 = vrot.lane.b32.xlu0 %v1158, 32
    %v1182 = vpop.permute.xlu0 %1181
    %v1184 = vmul.f32 %v1157, %v1182
    %1186 = vrot.lane.b32.xlu0 %v1184, 32
    %v1187 = vpop.permute.xlu0 %1186
    %v1189 = vadd.f32 %v1179, %v1187
    %v1190 = vmul.f32 %v1177, %v1062
    %1192 = vrot.lane.b32.xlu0 %v1178, 32
    %v1193 = vpop.permute.xlu0 %1192
    %v1195 = vmul.f32 %v1177, %v1193
    %1197 = vrot.lane.b32.xlu0 %v1195, 32
    %v1198 = vpop.permute.xlu0 %1197
    %v1200 = vadd.f32 %v1190, %v1198
    %v1201 = vtanh.pop %v1189
    %1203 = vrot.lane.b32.xlu0 %v1201, 32
    %v1204 = vpop.permute.xlu0 %1203
    %v1206 = vmul.f32 %v1157, %v1204
    %v1207 = vtanh.pop %v1200
    %1209 = vrot.lane.b32.xlu0 %v1207, 32
    %v1210 = vpop.permute.xlu0 %1209
    %v1212 = vmul.f32 %v1177, %v1210
    %1214 = vrot.lane.b32.xlu0 %v1206, 64
    %v1215 = vpop.permute.xlu0 %1214
    %s1217 = scalar_lea.vmem [#allocation4], 48
    %1218 = vst.msk [vmem:[%s1217] sm:$0xff] %vm263, %v1215
    %1220 = vrot.lane.b32.xlu0 %v1212, 64
    %v1221 = vpop.permute.xlu0 %1220
    %s1223 = scalar_lea.vmem [#allocation5], 8
    %1224 = vst.msk [vmem:[%s1223] sm:$0xff] %vm263, %v1221
    %s1225 = scalar_lea.vmem [#allocation2], 28
    %v1226 = vld [vmem:[%s1225] sm:$0xf]
    %v1227 = vunpack.c.l.bf16 %v1226
    %v1228 = vsel %vm263, %v1215, 0
    %1230 = vmatpush.msra.mxu0 0.0
    %1231 = vmatpush.msra.mxu0 0.0
    %1232 = vmatpush.msra.mxu0 0.0
    %1233 = vmatpush.msra.mxu0 0.0
    %1234 = vmatpush.msra.mxu0 0.0
    %1235 = vmatpush.msra.mxu0 0.0
    %1236 = vmatpush.msra.mxu0 0.0
    %1237 = vmatpush.msra.mxu0 0.0
    %1238 = vmatpush.msra.mxu0 0.0
    %1239 = vmatpush.msra.mxu0 0.0
    %1240 = vmatpush.msra.mxu0 0.0
    %1241 = vmatpush.msra.mxu0 0.0
    %1242 = vmatpush.msra.mxu0 %v256
    %1243 = vmatpush.msra.mxu0 %v255
    %1244 = vmatpush.msra.mxu0 %v254
    %1245 = vmatpush.msra.mxu0 %v253
    %1246 = vmatmul.f32.gmra.mxu0 %v1228
    %v1247 = vpop.f32.mrf.mxu0
    %v1248 = vadd.f32 0.0, %v1247
    %1249 = vdwg.mxu0
    %v1250 = vadd.f32 %v1227, %v1248
    %v1251 = vld [vmem:[#allocation3] sm:$0xf]
    %v1252 = vunpack.c.l.bf16 %v1251
    %v1253 = vsel %vm263, %v1221, 0
    %1255 = vmatpush.msra.mxu0 0.0
    %1256 = vmatpush.msra.mxu0 0.0
    %1257 = vmatpush.msra.mxu0 0.0
    %1258 = vmatpush.msra.mxu0 0.0
    %1259 = vmatpush.msra.mxu0 0.0
    %1260 = vmatpush.msra.mxu0 0.0
    %1261 = vmatpush.msra.mxu0 0.0
    %1262 = vmatpush.msra.mxu0 0.0
    %1263 = vmatpush.msra.mxu0 0.0
    %1264 = vmatpush.msra.mxu0 0.0
    %1265 = vmatpush.msra.mxu0 0.0
    %1266 = vmatpush.msra.mxu0 0.0
    %1267 = vmatpush.msra.mxu0 %v260
    %1268 = vmatpush.msra.mxu0 %v259
    %1269 = vmatpush.msra.mxu0 %v258
    %1270 = vmatpush.msra.mxu0 %v257
    %1271 = vmatmul.f32.gmra.mxu0 %v1253
    %v1272 = vpop.f32.mrf.mxu0
    %v1273 = vadd.f32 0.0, %v1272
    %1274 = vdwg.mxu0
    %v1275 = vadd.f32 %v1252, %v1273
    %v1276 = vxor.u32 %v1250, 2147483648
    %v1277 = vmul.f32 %v1276, 1.442695
    %v1278 = vpow.pop %v1277
    %v1279 = vadd.f32 %v1278, 1.0
    %v1280 = vrcp.pop %v1279
    %v1281 = vmul.f32 %v1279, %v1280
    %v1282 = vsub.f32 1.0, %v1281
    %v1283 = vmul.f32 %v1280, %v1282
    %v1284 = vadd.f32 %v1280, %v1283
    %vm1285 = vweird.f32 %v1279
    %vm1286 = vweird.f32 %v1280
    %vm1287 = vmor %vm1285, %vm1286
    %v1288 = vsel %vm1287, %v1280, %v1284
    %v1289 = vand.u32 2147483647, %v1279
    %vm1290 = vcmp.eq.f32.partialorder %v1289, 8.507059e+37
    %v1291 = vand.u32 %v1279, 2147483648
    %v1292 = vor.u32 1.1754944e-38, %v1291
    %v1293 = vsel %vm1290, %v1292, %v1288
    %v1294 = vmul.f32 1.0, %v1293
    %v1295 = vtanh.pop %v1250
    %v1296 = vxor.u32 %v1275, 2147483648
    %v1297 = vmul.f32 %v1296, 1.442695
    %v1298 = vpow.pop %v1297
    %v1299 = vadd.f32 %v1298, 1.0
    %v1300 = vrcp.pop %v1299
    %v1301 = vmul.f32 %v1299, %v1300
    %v1302 = vsub.f32 1.0, %v1301
    %v1303 = vmul.f32 %v1300, %v1302
    %v1304 = vadd.f32 %v1300, %v1303
    %vm1305 = vweird.f32 %v1299
    %vm1306 = vweird.f32 %v1300
    %vm1307 = vmor %vm1305, %vm1306
    %v1308 = vsel %vm1307, %v1300, %v1304
    %v1309 = vand.u32 2147483647, %v1299
    %vm1310 = vcmp.eq.f32.partialorder %v1309, 8.507059e+37
    %v1311 = vand.u32 %v1299, 2147483648
    %v1312 = vor.u32 1.1754944e-38, %v1311
    %v1313 = vsel %vm1310, %v1312, %v1308
    %v1314 = vmul.f32 1.0, %v1313
    %v1315 = vtanh.pop %v1275
    %v1316 = vmul.f32 %v1294, %v1189
    %1318 = vrot.lane.b32.xlu0 %v1295, 32
    %v1319 = vpop.permute.xlu0 %1318
    %v1321 = vmul.f32 %v1294, %v1319
    %1323 = vrot.lane.b32.xlu0 %v1321, 32
    %v1324 = vpop.permute.xlu0 %1323
    %v1326 = vadd.f32 %v1316, %v1324
    %v1327 = vmul.f32 %v1314, %v1200
    %1329 = vrot.lane.b32.xlu0 %v1315, 32
    %v1330 = vpop.permute.xlu0 %1329
    %v1332 = vmul.f32 %v1314, %v1330
    %1334 = vrot.lane.b32.xlu0 %v1332, 32
    %v1335 = vpop.permute.xlu0 %1334
    %v1337 = vadd.f32 %v1327, %v1335
    %v1338 = vtanh.pop %v1326
    %1340 = vrot.lane.b32.xlu0 %v1338, 32
    %v1341 = vpop.permute.xlu0 %1340
    %v1343 = vmul.f32 %v1294, %v1341
    %v1344 = vtanh.pop %v1337
    %1346 = vrot.lane.b32.xlu0 %v1344, 32
    %v1347 = vpop.permute.xlu0 %1346
    %v1349 = vmul.f32 %v1314, %v1347
    %1351 = vrot.lane.b32.xlu0 %v1343, 64
    %v1352 = vpop.permute.xlu0 %1351
    %s1354 = scalar_lea.vmem [#allocation4], 56
    %1355 = vst.msk [vmem:[%s1354] sm:$0xff] %vm263, %v1352
    %1357 = vrot.lane.b32.xlu0 %v1349, 64
    %v1358 = vpop.permute.xlu0 %1357
    %1360 = vst.msk [vmem:[#allocation5] sm:$0xff] %vm263, %v1358
    %v1361 = vld [vmem:[#allocation4] sm:$0xff]
    %v1362 = vld [vmem:[#allocation4 + $0x8] sm:$0xff]
    %v1363 = vld [vmem:[#allocation4 + $0x10] sm:$0xff]
    %v1364 = vld [vmem:[#allocation4 + $0x18] sm:$0xff]
    %v1365 = vld [vmem:[#allocation4 + $0x20] sm:$0xff]
    %v1366 = vld [vmem:[#allocation4 + $0x28] sm:$0xff]
    %v1367 = vld [vmem:[#allocation4 + $0x30] sm:$0xff]
    %v1368 = vld [vmem:[#allocation4 + $0x38] sm:$0xff]
    %v1369 = vld [vmem:[#allocation5] sm:$0xff]
    %v1370 = vld [vmem:[#allocation5 + $0x8] sm:$0xff]
    %v1371 = vld [vmem:[#allocation5 + $0x10] sm:$0xff]
    %v1372 = vld [vmem:[#allocation5 + $0x18] sm:$0xff]
    %v1373 = vld [vmem:[#allocation5 + $0x20] sm:$0xff]
    %v1374 = vld [vmem:[#allocation5 + $0x28] sm:$0xff]
    %v1375 = vld [vmem:[#allocation5 + $0x30] sm:$0xff]
    %v1376 = vld [vmem:[#allocation5 + $0x38] sm:$0xff]
    %1385 = vrot.lane.b32.xlu0 %v1369, 32
    %v1386 = vpop.permute.xlu0 %1385
    %1387 = vrot.lane.b32.xlu0 %v1370, 32
    %v1388 = vpop.permute.xlu0 %1387
    %1389 = vrot.lane.b32.xlu0 %v1371, 32
    %v1390 = vpop.permute.xlu0 %1389
    %1391 = vrot.lane.b32.xlu0 %v1372, 32
    %v1392 = vpop.permute.xlu0 %1391
    %1393 = vrot.lane.b32.xlu0 %v1373, 32
    %v1394 = vpop.permute.xlu0 %1393
    %1395 = vrot.lane.b32.xlu0 %v1374, 32
    %v1396 = vpop.permute.xlu0 %1395
    %1397 = vrot.lane.b32.xlu0 %v1375, 32
    %v1398 = vpop.permute.xlu0 %1397
    %1399 = vrot.lane.b32.xlu0 %v1376, 32
    %v1400 = vpop.permute.xlu0 %1399
    %v1409 = vsel %vm263, %v1361, %v1386
    %v1410 = vsel %vm263, %v1362, %v1388
    %v1411 = vsel %vm263, %v1363, %v1390
    %v1412 = vsel %vm263, %v1364, %v1392
    %v1413 = vsel %vm263, %v1365, %v1394
    %v1414 = vsel %vm263, %v1366, %v1396
    %v1415 = vsel %vm263, %v1367, %v1398
    %v1416 = vsel %vm263, %v1368, %v1400
    %v1417 = vpack.c.bf16 %v1410, %v1409
    %v1418 = vpack.c.bf16 %v1412, %v1411
    %v1419 = vpack.c.bf16 %v1414, %v1413
    %v1420 = vpack.c.bf16 %v1416, %v1415
    %v1421 = vld [vmem:[#allocation15] sm:$0xf]
    %v1422 = vld [vmem:[#allocation15 + $0x4] sm:$0xf]
    %v1423 = vld [vmem:[#allocation15 + $0x8] sm:$0xf]
    %v1424 = vld [vmem:[#allocation15 + $0xc] sm:$0xf]
    %v1425 = vld [vmem:[#allocation15 + $0x10] sm:$0xf]
    %v1426 = vld [vmem:[#allocation15 + $0x14] sm:$0xf]
    %v1427 = vld [vmem:[#allocation15 + $0x18] sm:$0xf]
    %v1428 = vld [vmem:[#allocation15 + $0x1c] sm:$0xf]
    %v1429 = vld [vmem:[%s6] sm:$0x1]
    %v1431 = vperm.slane %v1429, 0
    %v1441 = vunpack.c.l.b16 %v1421
    %v1442 = vunpack.c.l.b16 %v1422
    %v1443 = vunpack.c.l.b16 %v1423
    %v1444 = vunpack.c.l.b16 %v1424
    %v1445 = vunpack.c.l.b16 %v1425
    %v1446 = vunpack.c.l.b16 %v1426
    %v1447 = vunpack.c.l.b16 %v1427
    %v1448 = vunpack.c.l.b16 %v1428
    %v1449 = vpack.c.b16 %v1442, %v1441
    %v1450 = vpack.c.b16 %v1444, %v1443
    %v1451 = vpack.c.b16 %v1446, %v1445
    %v1452 = vpack.c.b16 %v1448, %v1447
    %vm1457 = vcmask 523264
    %v1459 = vsel %vm1457, %v1417, 0
    %v1462 = vsel %vm1457, %v1418, 0
    %v1465 = vsel %vm1457, %v1419, 0
    %v1468 = vsel %vm1457, %v1420, 0
    %1470 = vmatpush.bf16.msra.mxu0 0
    %1471 = vmatpush.bf16.msra.mxu0 0
    %1472 = vmatpush.bf16.msra.mxu0 0
    %1473 = vmatpush.bf16.msra.mxu0 0
    %1474 = vmatpush.bf16.msra.mxu0 %v1452
    %1475 = vmatpush.bf16.msra.mxu0 %v1451
    %1476 = vmatpush.bf16.msra.mxu0 %v1450
    %1477 = vmatpush.bf16.msra.mxu0 %v1449
    %1478 = vmatmul.bf16.gmra.mxu0 %v1459
    %v1479 = vpop.f32.mrf.mxu0
    %v1480 = vadd.f32 %v1431, %v1479
    %v1481 = vpop.f32.mrf.mxu0
    %v1482 = vadd.f32 %v1431, %v1481
    %1483 = vmatmul.bf16.gmra.mxu0 %v1462
    %v1484 = vpop.f32.mrf.mxu0
    %v1485 = vadd.f32 %v1431, %v1484
    %v1486 = vpop.f32.mrf.mxu0
    %v1487 = vadd.f32 %v1431, %v1486
    %1488 = vmatmul.bf16.gmra.mxu0 %v1465
    %v1489 = vpop.f32.mrf.mxu0
    %v1490 = vadd.f32 %v1431, %v1489
    %v1491 = vpop.f32.mrf.mxu0
    %v1492 = vadd.f32 %v1431, %v1491
    %1493 = vmatmul.bf16.gmra.mxu0 %v1468
    %v1494 = vpop.f32.mrf.mxu0
    %v1495 = vadd.f32 %v1431, %v1494
    %v1496 = vpop.f32.mrf.mxu0
    %v1497 = vadd.f32 %v1431, %v1496
    %1498 = vdwg.mxu0
    %1499 = vst [vmem:[#allocation17] sm:$0xff] %v1480
    %1500 = vst [vmem:[#allocation17 + $0x8] sm:$0xff] %v1482
    %1501 = vst [vmem:[#allocation17 + $0x10] sm:$0xff] %v1485
    %1502 = vst [vmem:[#allocation17 + $0x18] sm:$0xff] %v1487
    %1503 = vst [vmem:[#allocation17 + $0x20] sm:$0xff] %v1490
    %1504 = vst [vmem:[#allocation17 + $0x28] sm:$0xff] %v1492
    %1505 = vst [vmem:[#allocation17 + $0x30] sm:$0xff] %v1495
    %1506 = vst [vmem:[#allocation17 + $0x38] sm:$0xff] %v1497
    // Predicated region
    $region54: #{tpu_custom_call.1} parent=1 // pred_check
      _
    $region55: #{tpu_custom_call.1} parent=1 // pred_check_branch
      %1508 = sbr.rel (0) target = $region57
    $region56: #{tpu_custom_call.1} parent=1 // pred_region
      %1510 = vsyncadd [#allocation8], 0
      %s1511 = sshll.u32 [#allocation17], 4
      %s1512 = int_to_ptr.vmem [resolvable:$true] %s1511
      %s1513 = sshll.u32 %s7, 4
      %s1514 = int_to_ptr.hbm [resolvable:$true] %s1513
      %1519 = dma.vmem_to_hbm [thread:$0]  %s1512, 1024, %s1514, [#allocation8], 128, 128, 8
    $region57: #{tpu_custom_call.1} parent=1 // pred_fallthru
      _
    // Predicated region
    $region58: #{tpu_custom_call.1} parent=1 // pred_check
      _
    $region59: #{tpu_custom_call.1} parent=1 // pred_check_branch
      %1521 = sbr.rel (0) target = $region61
    $region60: #{tpu_custom_call.1} parent=1 // pred_region
      %1523 = dma.done [#allocation8], 1024
    $region61: #{tpu_custom_call.1} parent=1 // pred_fallthru
      _
    %1524 = vsyncpa [#allocation7], 1
    %1525 = vsyncpa [#allocation10], 1
    %1526 = vsyncpa [#allocation13], 1
    %1527 = vsyncpa [#allocation16], 1
    %1528 = vsyncpa [#allocation8], 1

</llo_original>
